<compile_context>
chip_gen: v7x
topology: tpu7x:2x2x1
jax: 0.10.0
libtpu: 0.0.40
codegen_flags: <defaults>
</compile_context>

<pallas_src>
import jax
import jax.numpy as jnp
from jax import lax
from jax.experimental import pallas as pl
from jax.experimental.pallas import tpu as pltpu


def _lstm_fc_kernel(x_ref, w_ih_ref, w_hh_ref, b_ref, w_fc_ref, b_fc_ref,
                    out_ref):
    """Whole-sequence LSTM recurrence + final FC in ONE kernel invocation.

    x_ref    : (B, S, D)   batch-first input, fully resident in VMEM
    w_ih_ref : (D, 4H)     transposed input-hidden weight (gate order i,f,g,o)
    w_hh_ref : (H, 4H)     transposed hidden-hidden weight
    b_ref    : (1, 4H)     bias_ih + bias_hh
    w_fc_ref : (H, O)      transposed FC weight
    b_fc_ref : (1, O)      FC bias
    out_ref  : (B, O)      last hidden state pushed through the FC
    """
    B, S, D = x_ref.shape
    H = w_hh_ref.shape[0]

    # ---- invariant loads / broadcasts hoisted out of the recurrence -------
    w_ih = w_ih_ref[...]                                   # (D, 4H)
    w_hh = w_hh_ref[...]                                   # (H, 4H)
    bias = jnp.broadcast_to(b_ref[...], (B, 4 * H))        # (B, 4H), hoisted

    # h / c carried purely in vregs across the unrolled loop (no VMEM traffic).
    c = jnp.zeros((B, H), jnp.float32)
    h = jnp.zeros((B, H), jnp.float32)

    # S is small and static -> fully unrolled; every slice below is static.
    for t in range(S):
        # h-independent input projection (+ bias): no serial dependence, so the
        # scheduler overlaps these MXU pushes with the recurrence chain.
        g_x = jnp.dot(x_ref[:, t, :], w_ih,
                      preferred_element_type=jnp.float32) + bias     # (B, 4H)
        gates = g_x + jnp.dot(h, w_hh,
                              preferred_element_type=jnp.float32)    # (B, 4H)

        # 4H = 64 lanes: every gate slice stays inside a single vreg.
        i_g = jax.nn.sigmoid(gates[:, 0 * H:1 * H])
        f_g = jax.nn.sigmoid(gates[:, 1 * H:2 * H])
        g_g = jnp.tanh(gates[:, 2 * H:3 * H])
        o_g = jax.nn.sigmoid(gates[:, 3 * H:4 * H])

        c = f_g * c + i_g * g_g
        h = o_g * jnp.tanh(c)

    # Fused final fully-connected layer on the last hidden state.
    out_ref[...] = (jnp.dot(h, w_fc_ref[...],
                            preferred_element_type=jnp.float32)
                    + b_fc_ref[...])


@jax.jit
def rnn_forward(x, params):
    """x: (B, S, D) batch-first float32.  Returns (B, 1, O)."""
    B, S, D = x.shape
    H = params["w_hh"].shape[1]
    O = params["b_fc"].shape[-1]

    w_ih_t = params["w_ih"].T                                         # (D, 4H)
    w_hh_t = params["w_hh"].T                                         # (H, 4H)
    b = (params["b_ih"] + params["b_hh"]).reshape(1, 4 * H)           # (1, 4H)
    w_fc_t = params["w_fc"].T                                         # (H, O)
    b_fc = params["b_fc"].reshape(1, O)                               # (1, O)

    out = pl.pallas_call(
        _lstm_fc_kernel,
        out_shape=jax.ShapeDtypeStruct((B, O), jnp.float32),
        grid_spec=pltpu.PrefetchScalarGridSpec(
            num_scalar_prefetch=0,
            grid=(1,),                      # single step: recurrence is in-kernel
            in_specs=[
                pl.BlockSpec((B, S, D), lambda i: (0, 0, 0)),         # x (whole)
                pl.BlockSpec((D, 4 * H), lambda i: (0, 0)),           # W_ih^T
                pl.BlockSpec((H, 4 * H), lambda i: (0, 0)),           # W_hh^T
                pl.BlockSpec((1, 4 * H), lambda i: (0, 0)),           # bias
                pl.BlockSpec((H, O), lambda i: (0, 0)),               # W_fc^T
                pl.BlockSpec((1, O), lambda i: (0, 0)),               # b_fc
            ],
            out_specs=pl.BlockSpec((B, O), lambda i: (0, 0)),
        ),
        compiler_params=pltpu.CompilerParams(
            dimension_semantics=("arbitrary",)),                      # sequential
    )(x.astype(jnp.float32), w_ih_t, w_hh_t, b, w_fc_t, b_fc)

    return out[:, None, :]                                            # (B, 1, O)


def rnn_forward_ref(x, params):
    """Pure-JAX reference (lax.scan LSTM + FC), for correctness check."""
    B = x.shape[0]
    H = params["w_hh"].shape[1]
    w_ih_t, w_hh_t = params["w_ih"].T, params["w_hh"].T
    b = params["b_ih"] + params["b_hh"]

    def step(carry, x_t):
        h, c = carry
        gates = x_t @ w_ih_t + h @ w_hh_t + b
        i = jax.nn.sigmoid(gates[:, 0 * H:1 * H])
        f = jax.nn.sigmoid(gates[:, 1 * H:2 * H])
        g = jnp.tanh(gates[:, 2 * H:3 * H])
        o = jax.nn.sigmoid(gates[:, 3 * H:4 * H])
        c = f * c + i * g
        h = o * jnp.tanh(c)
        return (h, c), None

    h0 = jnp.zeros((B, H), jnp.float32)
    (h_last, _), _ = lax.scan(step, (h0, h0), jnp.transpose(x, (1, 0, 2)))
    out = h_last @ params["w_fc"].T + params["b_fc"]
    return out[:, None, :]


def init_params(key, input_size, hidden_dim, output_size):
    """Deterministic init matching PyTorch LSTM/Linear shapes (uniform +-1/sqrt(H))."""
    ks = jax.random.split(key, 6)
    k = 1.0 / jnp.sqrt(hidden_dim)
    u = lambda kk, shape: jax.random.uniform(kk, shape, jnp.float32, -k, k)
    return {
        "w_ih": u(ks[0], (4 * hidden_dim, input_size)),   # weight_ih_l0
        "w_hh": u(ks[1], (4 * hidden_dim, hidden_dim)),   # weight_hh_l0
        "b_ih": u(ks[2], (4 * hidden_dim,)),
        "b_hh": u(ks[3], (4 * hidden_dim,)),
        "w_fc": u(ks[4], (output_size, hidden_dim)),      # fc.weight
        "b_fc": u(ks[5], (output_size,)),                 # fc.bias
    }


if __name__ == "__main__":
    # Rnn('lstm', input_size=16, output_size=8, hidden_dim=16, num_layers=1)
    B, S, D, H, O = 8, 8, 16, 16, 8

    key = jax.random.PRNGKey(0)
    kx, kp = jax.random.split(key)
    x = jax.random.normal(kx, (B, S, D), jnp.float32)
    params = init_params(kp, input_size=D, hidden_dim=H, output_size=O)

    out = rnn_forward(x, params)
    out = jax.block_until_ready(out)

    ref = rnn_forward_ref(x, params)
    assert out.shape == (B, 1, O), out.shape
    assert jnp.allclose(out, ref, atol=1e-4, rtol=1e-4), (
        float(jnp.max(jnp.abs(out - ref))))

    print("KERNEL_OK")
</pallas_src>

<mosaic_0001>
module attributes {stable_mosaic.version = 11 : i64} {
  func.func @_lstm_fc_kernel(%arg0: i32, %arg1: memref<8x8x16xf32, #tpu.memory_space<vmem>>, %arg2: memref<16x64xf32, #tpu.memory_space<vmem>>, %arg3: memref<16x64xf32, #tpu.memory_space<vmem>>, %arg4: memref<1x64xf32, #tpu.memory_space<vmem>>, %arg5: memref<16x8xf32, #tpu.memory_space<vmem>>, %arg6: memref<1x8xf32, #tpu.memory_space<vmem>>, %arg7: memref<8x8xf32, #tpu.memory_space<vmem>>) attributes {dimension_semantics = [#tpu.dimension_semantics<arbitrary>], iteration_bounds = array<i64: 1>, scalar_prefetch = 0 : i64, scratch_operands = 0 : i64, tpu.core_type = #tpu.core_type<tc>, window_params = [{pipeline_mode = #tpu.pipeline_mode<synchronous>, transform_indices = @transform_0, window_bounds = array<i64: 8, 8, 16>}, {pipeline_mode = #tpu.pipeline_mode<synchronous>, transform_indices = @transform_1, window_bounds = array<i64: 16, 64>}, {pipeline_mode = #tpu.pipeline_mode<synchronous>, transform_indices = @transform_2, window_bounds = array<i64: 16, 64>}, {pipeline_mode = #tpu.pipeline_mode<synchronous>, transform_indices = @transform_3, window_bounds = array<i64: 1, 64>}, {pipeline_mode = #tpu.pipeline_mode<synchronous>, transform_indices = @transform_4, window_bounds = array<i64: 16, 8>}, {pipeline_mode = #tpu.pipeline_mode<synchronous>, transform_indices = @transform_5, window_bounds = array<i64: 1, 8>}, {pipeline_mode = #tpu.pipeline_mode<synchronous>, transform_indices = @transform_6, window_bounds = array<i64: 8, 8>}]} {
    %c0 = arith.constant 0 : index
    %c0_0 = arith.constant 0 : index
    %0 = vector.load %arg2[%c0, %c0_0] : memref<16x64xf32, #tpu.memory_space<vmem>>, vector<16x64xf32>
    %c0_1 = arith.constant 0 : index
    %c0_2 = arith.constant 0 : index
    %1 = vector.load %arg3[%c0_1, %c0_2] : memref<16x64xf32, #tpu.memory_space<vmem>>, vector<16x64xf32>
    %c0_3 = arith.constant 0 : index
    %c0_4 = arith.constant 0 : index
    %2 = vector.load %arg4[%c0_3, %c0_4] : memref<1x64xf32, #tpu.memory_space<vmem>>, vector<1x64xf32>
    %3 = vector.shape_cast %2 : vector<1x64xf32> to vector<1x64xf32>
    %4 = vector.broadcast %3 : vector<1x64xf32> to vector<8x64xf32>
    %cst = arith.constant 0.000000e+00 : f32
    %5 = vector.broadcast %cst : f32 to vector<8x16xf32>
    %cst_5 = arith.constant 0.000000e+00 : f32
    %6 = vector.broadcast %cst_5 : f32 to vector<8x16xf32>
    %c0_6 = arith.constant 0 : index
    %c0_7 = arith.constant 0 : index
    %c0_8 = arith.constant 0 : index
    %7 = vector.load %arg1[%c0_6, %c0_7, %c0_8] : memref<8x8x16xf32, #tpu.memory_space<vmem>>, vector<8x1x16xf32>
    %8 = vector.shape_cast %7 : vector<8x1x16xf32> to vector<8x16xf32>
    %cst_9 = arith.constant dense<0.000000e+00> : vector<8x64xf32>
    %9 = tpu.matmul %8, %0, %cst_9 {dimension_numbers = #tpu.dot_dimension_numbers<[1], [0], [0], [1], [0, 0, 1, 1], [], []>} : vector<8x16xf32>, vector<16x64xf32>, vector<8x64xf32> -> vector<8x64xf32>
    %10 = arith.addf %9, %4 : vector<8x64xf32>
    %cst_10 = arith.constant dense<0.000000e+00> : vector<8x64xf32>
    %11 = tpu.matmul %6, %1, %cst_10 {dimension_numbers = #tpu.dot_dimension_numbers<[1], [0], [0], [1], [0, 0, 1, 1], [], []>} : vector<8x16xf32>, vector<16x64xf32>, vector<8x64xf32> -> vector<8x64xf32>
    %12 = arith.addf %10, %11 : vector<8x64xf32>
    %13 = vector.extract_strided_slice %12 {offsets = [0, 0], sizes = [8, 16], strides = [1, 1]} : vector<8x64xf32> to vector<8x16xf32>
    %14 = arith.negf %13 : vector<8x16xf32>
    %15 = math.exp %14 : vector<8x16xf32>
    %cst_11 = arith.constant 1.000000e+00 : f32
    %16 = vector.broadcast %cst_11 : f32 to vector<8x16xf32>
    %17 = arith.addf %16, %15 : vector<8x16xf32>
    %18 = arith.divf %16, %17 : vector<8x16xf32>
    %19 = vector.extract_strided_slice %12 {offsets = [0, 16], sizes = [8, 16], strides = [1, 1]} : vector<8x64xf32> to vector<8x16xf32>
    %20 = arith.negf %19 : vector<8x16xf32>
    %21 = math.exp %20 : vector<8x16xf32>
    %cst_12 = arith.constant 1.000000e+00 : f32
    %22 = vector.broadcast %cst_12 : f32 to vector<8x16xf32>
    %23 = arith.addf %22, %21 : vector<8x16xf32>
    %24 = arith.divf %22, %23 : vector<8x16xf32>
    %25 = vector.extract_strided_slice %12 {offsets = [0, 32], sizes = [8, 16], strides = [1, 1]} : vector<8x64xf32> to vector<8x16xf32>
    %26 = math.tanh %25 : vector<8x16xf32>
    %27 = vector.extract_strided_slice %12 {offsets = [0, 48], sizes = [8, 16], strides = [1, 1]} : vector<8x64xf32> to vector<8x16xf32>
    %28 = arith.negf %27 : vector<8x16xf32>
    %29 = math.exp %28 : vector<8x16xf32>
    %cst_13 = arith.constant 1.000000e+00 : f32
    %30 = vector.broadcast %cst_13 : f32 to vector<8x16xf32>
    %31 = arith.addf %30, %29 : vector<8x16xf32>
    %32 = arith.divf %30, %31 : vector<8x16xf32>
    %33 = arith.mulf %24, %5 : vector<8x16xf32>
    %34 = arith.mulf %18, %26 : vector<8x16xf32>
    %35 = arith.addf %33, %34 : vector<8x16xf32>
    %36 = math.tanh %35 : vector<8x16xf32>
    %37 = arith.mulf %32, %36 : vector<8x16xf32>
    %c0_14 = arith.constant 0 : index
    %c1 = arith.constant 1 : index
    %c0_15 = arith.constant 0 : index
    %38 = vector.load %arg1[%c0_14, %c1, %c0_15] : memref<8x8x16xf32, #tpu.memory_space<vmem>>, vector<8x1x16xf32>
    %39 = vector.shape_cast %38 : vector<8x1x16xf32> to vector<8x16xf32>
    %cst_16 = arith.constant dense<0.000000e+00> : vector<8x64xf32>
    %40 = tpu.matmul %39, %0, %cst_16 {dimension_numbers = #tpu.dot_dimension_numbers<[1], [0], [0], [1], [0, 0, 1, 1], [], []>} : vector<8x16xf32>, vector<16x64xf32>, vector<8x64xf32> -> vector<8x64xf32>
    %41 = arith.addf %40, %4 : vector<8x64xf32>
    %cst_17 = arith.constant dense<0.000000e+00> : vector<8x64xf32>
    %42 = tpu.matmul %37, %1, %cst_17 {dimension_numbers = #tpu.dot_dimension_numbers<[1], [0], [0], [1], [0, 0, 1, 1], [], []>} : vector<8x16xf32>, vector<16x64xf32>, vector<8x64xf32> -> vector<8x64xf32>
    %43 = arith.addf %41, %42 : vector<8x64xf32>
    %44 = vector.extract_strided_slice %43 {offsets = [0, 0], sizes = [8, 16], strides = [1, 1]} : vector<8x64xf32> to vector<8x16xf32>
    %45 = arith.negf %44 : vector<8x16xf32>
    %46 = math.exp %45 : vector<8x16xf32>
    %cst_18 = arith.constant 1.000000e+00 : f32
    %47 = vector.broadcast %cst_18 : f32 to vector<8x16xf32>
    %48 = arith.addf %47, %46 : vector<8x16xf32>
    %49 = arith.divf %47, %48 : vector<8x16xf32>
    %50 = vector.extract_strided_slice %43 {offsets = [0, 16], sizes = [8, 16], strides = [1, 1]} : vector<8x64xf32> to vector<8x16xf32>
    %51 = arith.negf %50 : vector<8x16xf32>
    %52 = math.exp %51 : vector<8x16xf32>
    %cst_19 = arith.constant 1.000000e+00 : f32
    %53 = vector.broadcast %cst_19 : f32 to vector<8x16xf32>
    %54 = arith.addf %53, %52 : vector<8x16xf32>
    %55 = arith.divf %53, %54 : vector<8x16xf32>
    %56 = vector.extract_strided_slice %43 {offsets = [0, 32], sizes = [8, 16], strides = [1, 1]} : vector<8x64xf32> to vector<8x16xf32>
    %57 = math.tanh %56 : vector<8x16xf32>
    %58 = vector.extract_strided_slice %43 {offsets = [0, 48], sizes = [8, 16], strides = [1, 1]} : vector<8x64xf32> to vector<8x16xf32>
    %59 = arith.negf %58 : vector<8x16xf32>
    %60 = math.exp %59 : vector<8x16xf32>
    %cst_20 = arith.constant 1.000000e+00 : f32
    %61 = vector.broadcast %cst_20 : f32 to vector<8x16xf32>
    %62 = arith.addf %61, %60 : vector<8x16xf32>
    %63 = arith.divf %61, %62 : vector<8x16xf32>
    %64 = arith.mulf %55, %35 : vector<8x16xf32>
    %65 = arith.mulf %49, %57 : vector<8x16xf32>
    %66 = arith.addf %64, %65 : vector<8x16xf32>
    %67 = math.tanh %66 : vector<8x16xf32>
    %68 = arith.mulf %63, %67 : vector<8x16xf32>
    %c0_21 = arith.constant 0 : index
    %c2 = arith.constant 2 : index
    %c0_22 = arith.constant 0 : index
    %69 = vector.load %arg1[%c0_21, %c2, %c0_22] : memref<8x8x16xf32, #tpu.memory_space<vmem>>, vector<8x1x16xf32>
    %70 = vector.shape_cast %69 : vector<8x1x16xf32> to vector<8x16xf32>
    %cst_23 = arith.constant dense<0.000000e+00> : vector<8x64xf32>
    %71 = tpu.matmul %70, %0, %cst_23 {dimension_numbers = #tpu.dot_dimension_numbers<[1], [0], [0], [1], [0, 0, 1, 1], [], []>} : vector<8x16xf32>, vector<16x64xf32>, vector<8x64xf32> -> vector<8x64xf32>
    %72 = arith.addf %71, %4 : vector<8x64xf32>
    %cst_24 = arith.constant dense<0.000000e+00> : vector<8x64xf32>
    %73 = tpu.matmul %68, %1, %cst_24 {dimension_numbers = #tpu.dot_dimension_numbers<[1], [0], [0], [1], [0, 0, 1, 1], [], []>} : vector<8x16xf32>, vector<16x64xf32>, vector<8x64xf32> -> vector<8x64xf32>
    %74 = arith.addf %72, %73 : vector<8x64xf32>
    %75 = vector.extract_strided_slice %74 {offsets = [0, 0], sizes = [8, 16], strides = [1, 1]} : vector<8x64xf32> to vector<8x16xf32>
    %76 = arith.negf %75 : vector<8x16xf32>
    %77 = math.exp %76 : vector<8x16xf32>
    %cst_25 = arith.constant 1.000000e+00 : f32
    %78 = vector.broadcast %cst_25 : f32 to vector<8x16xf32>
    %79 = arith.addf %78, %77 : vector<8x16xf32>
    %80 = arith.divf %78, %79 : vector<8x16xf32>
    %81 = vector.extract_strided_slice %74 {offsets = [0, 16], sizes = [8, 16], strides = [1, 1]} : vector<8x64xf32> to vector<8x16xf32>
    %82 = arith.negf %81 : vector<8x16xf32>
    %83 = math.exp %82 : vector<8x16xf32>
    %cst_26 = arith.constant 1.000000e+00 : f32
    %84 = vector.broadcast %cst_26 : f32 to vector<8x16xf32>
    %85 = arith.addf %84, %83 : vector<8x16xf32>
    %86 = arith.divf %84, %85 : vector<8x16xf32>
    %87 = vector.extract_strided_slice %74 {offsets = [0, 32], sizes = [8, 16], strides = [1, 1]} : vector<8x64xf32> to vector<8x16xf32>
    %88 = math.tanh %87 : vector<8x16xf32>
    %89 = vector.extract_strided_slice %74 {offsets = [0, 48], sizes = [8, 16], strides = [1, 1]} : vector<8x64xf32> to vector<8x16xf32>
    %90 = arith.negf %89 : vector<8x16xf32>
    %91 = math.exp %90 : vector<8x16xf32>
    %cst_27 = arith.constant 1.000000e+00 : f32
    %92 = vector.broadcast %cst_27 : f32 to vector<8x16xf32>
    %93 = arith.addf %92, %91 : vector<8x16xf32>
    %94 = arith.divf %92, %93 : vector<8x16xf32>
    %95 = arith.mulf %86, %66 : vector<8x16xf32>
    %96 = arith.mulf %80, %88 : vector<8x16xf32>
    %97 = arith.addf %95, %96 : vector<8x16xf32>
    %98 = math.tanh %97 : vector<8x16xf32>
    %99 = arith.mulf %94, %98 : vector<8x16xf32>
    %c0_28 = arith.constant 0 : index
    %c3 = arith.constant 3 : index
    %c0_29 = arith.constant 0 : index
    %100 = vector.load %arg1[%c0_28, %c3, %c0_29] : memref<8x8x16xf32, #tpu.memory_space<vmem>>, vector<8x1x16xf32>
    %101 = vector.shape_cast %100 : vector<8x1x16xf32> to vector<8x16xf32>
    %cst_30 = arith.constant dense<0.000000e+00> : vector<8x64xf32>
    %102 = tpu.matmul %101, %0, %cst_30 {dimension_numbers = #tpu.dot_dimension_numbers<[1], [0], [0], [1], [0, 0, 1, 1], [], []>} : vector<8x16xf32>, vector<16x64xf32>, vector<8x64xf32> -> vector<8x64xf32>
    %103 = arith.addf %102, %4 : vector<8x64xf32>
    %cst_31 = arith.constant dense<0.000000e+00> : vector<8x64xf32>
    %104 = tpu.matmul %99, %1, %cst_31 {dimension_numbers = #tpu.dot_dimension_numbers<[1], [0], [0], [1], [0, 0, 1, 1], [], []>} : vector<8x16xf32>, vector<16x64xf32>, vector<8x64xf32> -> vector<8x64xf32>
    %105 = arith.addf %103, %104 : vector<8x64xf32>
    %106 = vector.extract_strided_slice %105 {offsets = [0, 0], sizes = [8, 16], strides = [1, 1]} : vector<8x64xf32> to vector<8x16xf32>
    %107 = arith.negf %106 : vector<8x16xf32>
    %108 = math.exp %107 : vector<8x16xf32>
    %cst_32 = arith.constant 1.000000e+00 : f32
    %109 = vector.broadcast %cst_32 : f32 to vector<8x16xf32>
    %110 = arith.addf %109, %108 : vector<8x16xf32>
    %111 = arith.divf %109, %110 : vector<8x16xf32>
    %112 = vector.extract_strided_slice %105 {offsets = [0, 16], sizes = [8, 16], strides = [1, 1]} : vector<8x64xf32> to vector<8x16xf32>
    %113 = arith.negf %112 : vector<8x16xf32>
    %114 = math.exp %113 : vector<8x16xf32>
    %cst_33 = arith.constant 1.000000e+00 : f32
    %115 = vector.broadcast %cst_33 : f32 to vector<8x16xf32>
    %116 = arith.addf %115, %114 : vector<8x16xf32>
    %117 = arith.divf %115, %116 : vector<8x16xf32>
    %118 = vector.extract_strided_slice %105 {offsets = [0, 32], sizes = [8, 16], strides = [1, 1]} : vector<8x64xf32> to vector<8x16xf32>
    %119 = math.tanh %118 : vector<8x16xf32>
    %120 = vector.extract_strided_slice %105 {offsets = [0, 48], sizes = [8, 16], strides = [1, 1]} : vector<8x64xf32> to vector<8x16xf32>
    %121 = arith.negf %120 : vector<8x16xf32>
    %122 = math.exp %121 : vector<8x16xf32>
    %cst_34 = arith.constant 1.000000e+00 : f32
    %123 = vector.broadcast %cst_34 : f32 to vector<8x16xf32>
    %124 = arith.addf %123, %122 : vector<8x16xf32>
    %125 = arith.divf %123, %124 : vector<8x16xf32>
    %126 = arith.mulf %117, %97 : vector<8x16xf32>
    %127 = arith.mulf %111, %119 : vector<8x16xf32>
    %128 = arith.addf %126, %127 : vector<8x16xf32>
    %129 = math.tanh %128 : vector<8x16xf32>
    %130 = arith.mulf %125, %129 : vector<8x16xf32>
    %c0_35 = arith.constant 0 : index
    %c4 = arith.constant 4 : index
    %c0_36 = arith.constant 0 : index
    %131 = vector.load %arg1[%c0_35, %c4, %c0_36] : memref<8x8x16xf32, #tpu.memory_space<vmem>>, vector<8x1x16xf32>
    %132 = vector.shape_cast %131 : vector<8x1x16xf32> to vector<8x16xf32>
    %cst_37 = arith.constant dense<0.000000e+00> : vector<8x64xf32>
    %133 = tpu.matmul %132, %0, %cst_37 {dimension_numbers = #tpu.dot_dimension_numbers<[1], [0], [0], [1], [0, 0, 1, 1], [], []>} : vector<8x16xf32>, vector<16x64xf32>, vector<8x64xf32> -> vector<8x64xf32>
    %134 = arith.addf %133, %4 : vector<8x64xf32>
    %cst_38 = arith.constant dense<0.000000e+00> : vector<8x64xf32>
    %135 = tpu.matmul %130, %1, %cst_38 {dimension_numbers = #tpu.dot_dimension_numbers<[1], [0], [0], [1], [0, 0, 1, 1], [], []>} : vector<8x16xf32>, vector<16x64xf32>, vector<8x64xf32> -> vector<8x64xf32>
    %136 = arith.addf %134, %135 : vector<8x64xf32>
    %137 = vector.extract_strided_slice %136 {offsets = [0, 0], sizes = [8, 16], strides = [1, 1]} : vector<8x64xf32> to vector<8x16xf32>
    %138 = arith.negf %137 : vector<8x16xf32>
    %139 = math.exp %138 : vector<8x16xf32>
    %cst_39 = arith.constant 1.000000e+00 : f32
    %140 = vector.broadcast %cst_39 : f32 to vector<8x16xf32>
    %141 = arith.addf %140, %139 : vector<8x16xf32>
    %142 = arith.divf %140, %141 : vector<8x16xf32>
    %143 = vector.extract_strided_slice %136 {offsets = [0, 16], sizes = [8, 16], strides = [1, 1]} : vector<8x64xf32> to vector<8x16xf32>
    %144 = arith.negf %143 : vector<8x16xf32>
    %145 = math.exp %144 : vector<8x16xf32>
    %cst_40 = arith.constant 1.000000e+00 : f32
    %146 = vector.broadcast %cst_40 : f32 to vector<8x16xf32>
    %147 = arith.addf %146, %145 : vector<8x16xf32>
    %148 = arith.divf %146, %147 : vector<8x16xf32>
    %149 = vector.extract_strided_slice %136 {offsets = [0, 32], sizes = [8, 16], strides = [1, 1]} : vector<8x64xf32> to vector<8x16xf32>
    %150 = math.tanh %149 : vector<8x16xf32>
    %151 = vector.extract_strided_slice %136 {offsets = [0, 48], sizes = [8, 16], strides = [1, 1]} : vector<8x64xf32> to vector<8x16xf32>
    %152 = arith.negf %151 : vector<8x16xf32>
    %153 = math.exp %152 : vector<8x16xf32>
    %cst_41 = arith.constant 1.000000e+00 : f32
    %154 = vector.broadcast %cst_41 : f32 to vector<8x16xf32>
    %155 = arith.addf %154, %153 : vector<8x16xf32>
    %156 = arith.divf %154, %155 : vector<8x16xf32>
    %157 = arith.mulf %148, %128 : vector<8x16xf32>
    %158 = arith.mulf %142, %150 : vector<8x16xf32>
    %159 = arith.addf %157, %158 : vector<8x16xf32>
    %160 = math.tanh %159 : vector<8x16xf32>
    %161 = arith.mulf %156, %160 : vector<8x16xf32>
    %c0_42 = arith.constant 0 : index
    %c5 = arith.constant 5 : index
    %c0_43 = arith.constant 0 : index
    %162 = vector.load %arg1[%c0_42, %c5, %c0_43] : memref<8x8x16xf32, #tpu.memory_space<vmem>>, vector<8x1x16xf32>
    %163 = vector.shape_cast %162 : vector<8x1x16xf32> to vector<8x16xf32>
    %cst_44 = arith.constant dense<0.000000e+00> : vector<8x64xf32>
    %164 = tpu.matmul %163, %0, %cst_44 {dimension_numbers = #tpu.dot_dimension_numbers<[1], [0], [0], [1], [0, 0, 1, 1], [], []>} : vector<8x16xf32>, vector<16x64xf32>, vector<8x64xf32> -> vector<8x64xf32>
    %165 = arith.addf %164, %4 : vector<8x64xf32>
    %cst_45 = arith.constant dense<0.000000e+00> : vector<8x64xf32>
    %166 = tpu.matmul %161, %1, %cst_45 {dimension_numbers = #tpu.dot_dimension_numbers<[1], [0], [0], [1], [0, 0, 1, 1], [], []>} : vector<8x16xf32>, vector<16x64xf32>, vector<8x64xf32> -> vector<8x64xf32>
    %167 = arith.addf %165, %166 : vector<8x64xf32>
    %168 = vector.extract_strided_slice %167 {offsets = [0, 0], sizes = [8, 16], strides = [1, 1]} : vector<8x64xf32> to vector<8x16xf32>
    %169 = arith.negf %168 : vector<8x16xf32>
    %170 = math.exp %169 : vector<8x16xf32>
    %cst_46 = arith.constant 1.000000e+00 : f32
    %171 = vector.broadcast %cst_46 : f32 to vector<8x16xf32>
    %172 = arith.addf %171, %170 : vector<8x16xf32>
    %173 = arith.divf %171, %172 : vector<8x16xf32>
    %174 = vector.extract_strided_slice %167 {offsets = [0, 16], sizes = [8, 16], strides = [1, 1]} : vector<8x64xf32> to vector<8x16xf32>
    %175 = arith.negf %174 : vector<8x16xf32>
    %176 = math.exp %175 : vector<8x16xf32>
    %cst_47 = arith.constant 1.000000e+00 : f32
    %177 = vector.broadcast %cst_47 : f32 to vector<8x16xf32>
    %178 = arith.addf %177, %176 : vector<8x16xf32>
    %179 = arith.divf %177, %178 : vector<8x16xf32>
    %180 = vector.extract_strided_slice %167 {offsets = [0, 32], sizes = [8, 16], strides = [1, 1]} : vector<8x64xf32> to vector<8x16xf32>
    %181 = math.tanh %180 : vector<8x16xf32>
    %182 = vector.extract_strided_slice %167 {offsets = [0, 48], sizes = [8, 16], strides = [1, 1]} : vector<8x64xf32> to vector<8x16xf32>
    %183 = arith.negf %182 : vector<8x16xf32>
    %184 = math.exp %183 : vector<8x16xf32>
    %cst_48 = arith.constant 1.000000e+00 : f32
    %185 = vector.broadcast %cst_48 : f32 to vector<8x16xf32>
    %186 = arith.addf %185, %184 : vector<8x16xf32>
    %187 = arith.divf %185, %186 : vector<8x16xf32>
    %188 = arith.mulf %179, %159 : vector<8x16xf32>
    %189 = arith.mulf %173, %181 : vector<8x16xf32>
    %190 = arith.addf %188, %189 : vector<8x16xf32>
    %191 = math.tanh %190 : vector<8x16xf32>
    %192 = arith.mulf %187, %191 : vector<8x16xf32>
    %c0_49 = arith.constant 0 : index
    %c6 = arith.constant 6 : index
    %c0_50 = arith.constant 0 : index
    %193 = vector.load %arg1[%c0_49, %c6, %c0_50] : memref<8x8x16xf32, #tpu.memory_space<vmem>>, vector<8x1x16xf32>
    %194 = vector.shape_cast %193 : vector<8x1x16xf32> to vector<8x16xf32>
    %cst_51 = arith.constant dense<0.000000e+00> : vector<8x64xf32>
    %195 = tpu.matmul %194, %0, %cst_51 {dimension_numbers = #tpu.dot_dimension_numbers<[1], [0], [0], [1], [0, 0, 1, 1], [], []>} : vector<8x16xf32>, vector<16x64xf32>, vector<8x64xf32> -> vector<8x64xf32>
    %196 = arith.addf %195, %4 : vector<8x64xf32>
    %cst_52 = arith.constant dense<0.000000e+00> : vector<8x64xf32>
    %197 = tpu.matmul %192, %1, %cst_52 {dimension_numbers = #tpu.dot_dimension_numbers<[1], [0], [0], [1], [0, 0, 1, 1], [], []>} : vector<8x16xf32>, vector<16x64xf32>, vector<8x64xf32> -> vector<8x64xf32>
    %198 = arith.addf %196, %197 : vector<8x64xf32>
    %199 = vector.extract_strided_slice %198 {offsets = [0, 0], sizes = [8, 16], strides = [1, 1]} : vector<8x64xf32> to vector<8x16xf32>
    %200 = arith.negf %199 : vector<8x16xf32>
    %201 = math.exp %200 : vector<8x16xf32>
    %cst_53 = arith.constant 1.000000e+00 : f32
    %202 = vector.broadcast %cst_53 : f32 to vector<8x16xf32>
    %203 = arith.addf %202, %201 : vector<8x16xf32>
    %204 = arith.divf %202, %203 : vector<8x16xf32>
    %205 = vector.extract_strided_slice %198 {offsets = [0, 16], sizes = [8, 16], strides = [1, 1]} : vector<8x64xf32> to vector<8x16xf32>
    %206 = arith.negf %205 : vector<8x16xf32>
    %207 = math.exp %206 : vector<8x16xf32>
    %cst_54 = arith.constant 1.000000e+00 : f32
    %208 = vector.broadcast %cst_54 : f32 to vector<8x16xf32>
    %209 = arith.addf %208, %207 : vector<8x16xf32>
    %210 = arith.divf %208, %209 : vector<8x16xf32>
    %211 = vector.extract_strided_slice %198 {offsets = [0, 32], sizes = [8, 16], strides = [1, 1]} : vector<8x64xf32> to vector<8x16xf32>
    %212 = math.tanh %211 : vector<8x16xf32>
    %213 = vector.extract_strided_slice %198 {offsets = [0, 48], sizes = [8, 16], strides = [1, 1]} : vector<8x64xf32> to vector<8x16xf32>
    %214 = arith.negf %213 : vector<8x16xf32>
    %215 = math.exp %214 : vector<8x16xf32>
    %cst_55 = arith.constant 1.000000e+00 : f32
    %216 = vector.broadcast %cst_55 : f32 to vector<8x16xf32>
    %217 = arith.addf %216, %215 : vector<8x16xf32>
    %218 = arith.divf %216, %217 : vector<8x16xf32>
    %219 = arith.mulf %210, %190 : vector<8x16xf32>
    %220 = arith.mulf %204, %212 : vector<8x16xf32>
    %221 = arith.addf %219, %220 : vector<8x16xf32>
    %222 = math.tanh %221 : vector<8x16xf32>
    %223 = arith.mulf %218, %222 : vector<8x16xf32>
    %c0_56 = arith.constant 0 : index
    %c7 = arith.constant 7 : index
    %c0_57 = arith.constant 0 : index
    %224 = vector.load %arg1[%c0_56, %c7, %c0_57] : memref<8x8x16xf32, #tpu.memory_space<vmem>>, vector<8x1x16xf32>
    %225 = vector.shape_cast %224 : vector<8x1x16xf32> to vector<8x16xf32>
    %cst_58 = arith.constant dense<0.000000e+00> : vector<8x64xf32>
    %226 = tpu.matmul %225, %0, %cst_58 {dimension_numbers = #tpu.dot_dimension_numbers<[1], [0], [0], [1], [0, 0, 1, 1], [], []>} : vector<8x16xf32>, vector<16x64xf32>, vector<8x64xf32> -> vector<8x64xf32>
    %227 = arith.addf %226, %4 : vector<8x64xf32>
    %cst_59 = arith.constant dense<0.000000e+00> : vector<8x64xf32>
    %228 = tpu.matmul %223, %1, %cst_59 {dimension_numbers = #tpu.dot_dimension_numbers<[1], [0], [0], [1], [0, 0, 1, 1], [], []>} : vector<8x16xf32>, vector<16x64xf32>, vector<8x64xf32> -> vector<8x64xf32>
    %229 = arith.addf %227, %228 : vector<8x64xf32>
    %230 = vector.extract_strided_slice %229 {offsets = [0, 0], sizes = [8, 16], strides = [1, 1]} : vector<8x64xf32> to vector<8x16xf32>
    %231 = arith.negf %230 : vector<8x16xf32>
    %232 = math.exp %231 : vector<8x16xf32>
    %cst_60 = arith.constant 1.000000e+00 : f32
    %233 = vector.broadcast %cst_60 : f32 to vector<8x16xf32>
    %234 = arith.addf %233, %232 : vector<8x16xf32>
    %235 = arith.divf %233, %234 : vector<8x16xf32>
    %236 = vector.extract_strided_slice %229 {offsets = [0, 16], sizes = [8, 16], strides = [1, 1]} : vector<8x64xf32> to vector<8x16xf32>
    %237 = arith.negf %236 : vector<8x16xf32>
    %238 = math.exp %237 : vector<8x16xf32>
    %cst_61 = arith.constant 1.000000e+00 : f32
    %239 = vector.broadcast %cst_61 : f32 to vector<8x16xf32>
    %240 = arith.addf %239, %238 : vector<8x16xf32>
    %241 = arith.divf %239, %240 : vector<8x16xf32>
    %242 = vector.extract_strided_slice %229 {offsets = [0, 32], sizes = [8, 16], strides = [1, 1]} : vector<8x64xf32> to vector<8x16xf32>
    %243 = math.tanh %242 : vector<8x16xf32>
    %244 = vector.extract_strided_slice %229 {offsets = [0, 48], sizes = [8, 16], strides = [1, 1]} : vector<8x64xf32> to vector<8x16xf32>
    %245 = arith.negf %244 : vector<8x16xf32>
    %246 = math.exp %245 : vector<8x16xf32>
    %cst_62 = arith.constant 1.000000e+00 : f32
    %247 = vector.broadcast %cst_62 : f32 to vector<8x16xf32>
    %248 = arith.addf %247, %246 : vector<8x16xf32>
    %249 = arith.divf %247, %248 : vector<8x16xf32>
    %250 = arith.mulf %241, %221 : vector<8x16xf32>
    %251 = arith.mulf %235, %243 : vector<8x16xf32>
    %252 = arith.addf %250, %251 : vector<8x16xf32>
    %253 = math.tanh %252 : vector<8x16xf32>
    %254 = arith.mulf %249, %253 : vector<8x16xf32>
    %c0_63 = arith.constant 0 : index
    %c0_64 = arith.constant 0 : index
    %255 = vector.load %arg5[%c0_63, %c0_64] : memref<16x8xf32, #tpu.memory_space<vmem>>, vector<16x8xf32>
    %cst_65 = arith.constant dense<0.000000e+00> : vector<8x8xf32>
    %256 = tpu.matmul %254, %255, %cst_65 {dimension_numbers = #tpu.dot_dimension_numbers<[1], [0], [0], [1], [0, 0, 1, 1], [], []>} : vector<8x16xf32>, vector<16x8xf32>, vector<8x8xf32> -> vector<8x8xf32>
    %c0_66 = arith.constant 0 : index
    %c0_67 = arith.constant 0 : index
    %257 = vector.load %arg6[%c0_66, %c0_67] : memref<1x8xf32, #tpu.memory_space<vmem>>, vector<1x8xf32>
    %258 = vector.broadcast %257 : vector<1x8xf32> to vector<8x8xf32>
    %259 = arith.addf %256, %258 : vector<8x8xf32>
    %c0_68 = arith.constant 0 : index
    %c0_69 = arith.constant 0 : index
    %260 = vector.load %arg7[%c0_68, %c0_69] : memref<8x8xf32, #tpu.memory_space<vmem>>, vector<8x8xf32>
    tpu.vector_store %arg7[%c0_68, %c0_69], %259 {strides = array<i32>} : memref<8x8xf32, #tpu.memory_space<vmem>>, vector<8x8xf32>,
    return
  }
  func.func @transform_0(%arg0: i32) -> (i32, i32, i32) {
    %c0_i32 = arith.constant 0 : i32
    %c0_i32_0 = arith.constant 0 : i32
    %c0_i32_1 = arith.constant 0 : i32
    %c0_i32_2 = arith.constant 0 : i32
    return %c0_i32, %c0_i32_0, %c0_i32_1 : i32, i32, i32
  }
  func.func @transform_1(%arg0: i32) -> (i32, i32) {
    %c0_i32 = arith.constant 0 : i32
    %c0_i32_0 = arith.constant 0 : i32
    %c0_i32_1 = arith.constant 0 : i32
    return %c0_i32, %c0_i32_0 : i32, i32
  }
  func.func @transform_2(%arg0: i32) -> (i32, i32) {
    %c0_i32 = arith.constant 0 : i32
    %c0_i32_0 = arith.constant 0 : i32
    %c0_i32_1 = arith.constant 0 : i32
    return %c0_i32, %c0_i32_0 : i32, i32
  }
  func.func @transform_3(%arg0: i32) -> (i32, i32) {
    %c0_i32 = arith.constant 0 : i32
    %c0_i32_0 = arith.constant 0 : i32
    %c0_i32_1 = arith.constant 0 : i32
    return %c0_i32, %c0_i32_0 : i32, i32
  }
  func.func @transform_4(%arg0: i32) -> (i32, i32) {
    %c0_i32 = arith.constant 0 : i32
    %c0_i32_0 = arith.constant 0 : i32
    %c0_i32_1 = arith.constant 0 : i32
    return %c0_i32, %c0_i32_0 : i32, i32
  }
  func.func @transform_5(%arg0: i32) -> (i32, i32) {
    %c0_i32 = arith.constant 0 : i32
    %c0_i32_0 = arith.constant 0 : i32
    %c0_i32_1 = arith.constant 0 : i32
    return %c0_i32, %c0_i32_0 : i32, i32
  }
  func.func @transform_6(%arg0: i32) -> (i32, i32) {
    %c0_i32 = arith.constant 0 : i32
    %c0_i32_0 = arith.constant 0 : i32
    %c0_i32_1 = arith.constant 0 : i32
    return %c0_i32, %c0_i32_0 : i32, i32
  }
}

</mosaic_0001>

<llo_original>
// kernel: rnn_forward.1
$region0: #{rnn_forward.1}
  #allocation0 [shape = 'u32[]', space=smem, size = 0x4, offset = 0x4, fixed_abs, tag = 'smem constant byte address 0x4 - core index']
  #allocation1 [shape = 'u32[144,128]{1,0:T(1,128)}', space=vmem, size = 0x12000, scoped, tag = 'internal scratch']
  %s0 = inlined_call_operand.hbm [shape: f32[8,8,16], index: 0, kind: input, shape index: {}]
  %s1 = inlined_call_operand.vmem [shape: f32[16,64], index: 1, kind: input, shape index: {}]
  %s2 = inlined_call_operand.vmem [shape: f32[16,64], index: 2, kind: input, shape index: {}]
  %s3 = inlined_call_operand.vmem [shape: f32[1,64], index: 3, kind: input, shape index: {}]
  %s4 = inlined_call_operand.vmem [shape: f32[16,8], index: 4, kind: input, shape index: {}]
  %s5 = inlined_call_operand.vmem [shape: f32[1,8], index: 5, kind: input, shape index: {}]
  %s6 = inlined_call_operand.hbm [shape: f32[8,8], index: 6, kind: output, shape index: {}]
  %s7 = sld [smem:[#allocation0]]
  $region38: #{rnn_forward.1} parent=0
    _
  %s9 = ssub.s32 1, %s7
  %s10 = scalar_select 0, %s9, %s7
  $region1: #{rnn_forward.1} parent=0
    #allocation2 [shape = 'u8[32768]{0}', space=vmem, size = 0x8000, scoped, tag = 'input window, operand 0, single buffered']
    #allocation3 [shape = 's32[1]{0}', space=sflag, size = 0x4, scoped, tag = 'scoped memory for rnn_forward.1']
    #allocation4 [shape = 's32[1]{0}', space=sflag, size = 0x4, scoped, tag = 'scoped memory for rnn_forward.1']
    #allocation5 [shape = 'u8[4096]{0}', space=vmem, size = 0x1000, scoped, tag = 'output window, operand 0, single buffered']
    %11 = vsyncpa [#allocation3], 0
    %12 = vsyncpa [#allocation4], 0
    // Predicated region
    $region2: #{rnn_forward.1} parent=1 // pred_check
      _
    $region3: #{rnn_forward.1} parent=1 // pred_check_branch
      %14 = sbr.rel (0) target = $region5
    $region4: #{rnn_forward.1} parent=1 // pred_region
      %s16 = ssub.s32 1024, 1024
      %17 = vsyncadd [#allocation3], %s16
      %s18 = sshll.u32 [#allocation2], 4
      %s19 = int_to_ptr.vmem [resolvable:$true] %s18
      %24 = dma.hbm_to_vmem [thread:$0]  %s0, 1024, %s19, [#allocation3], 128, 128, 8
    $region5: #{rnn_forward.1} parent=1 // pred_fallthru
      _
    // Predicated region
    $region6: #{rnn_forward.1} parent=1 // pred_check
      _
    $region7: #{rnn_forward.1} parent=1 // pred_check_branch
      %26 = sbr.rel (0) target = $region9
    $region8: #{rnn_forward.1} parent=1 // pred_region
      _
    $region9: #{rnn_forward.1} parent=1 // pred_fallthru
      _
    // Predicated region
    $region10: #{rnn_forward.1} parent=1 // pred_check
      _
    $region11: #{rnn_forward.1} parent=1 // pred_check_branch
      %28 = sbr.rel (0) target = $region13
    $region12: #{rnn_forward.1} parent=1 // pred_region
      _
    $region13: #{rnn_forward.1} parent=1 // pred_fallthru
      _
    // Predicated region
    $region14: #{rnn_forward.1} parent=1 // pred_check
      _
    $region15: #{rnn_forward.1} parent=1 // pred_check_branch
      %30 = sbr.rel (0) target = $region17
    $region16: #{rnn_forward.1} parent=1 // pred_region
      _
    $region17: #{rnn_forward.1} parent=1 // pred_fallthru
      _
    // Predicated region
    $region18: #{rnn_forward.1} parent=1 // pred_check
      _
    $region19: #{rnn_forward.1} parent=1 // pred_check_branch
      %32 = sbr.rel (0) target = $region21
    $region20: #{rnn_forward.1} parent=1 // pred_region
      _
    $region21: #{rnn_forward.1} parent=1 // pred_fallthru
      _
    // Predicated region
    $region22: #{rnn_forward.1} parent=1 // pred_check
      _
    $region23: #{rnn_forward.1} parent=1 // pred_check_branch
      %34 = sbr.rel (0) target = $region25
    $region24: #{rnn_forward.1} parent=1 // pred_region
      _
    $region25: #{rnn_forward.1} parent=1 // pred_fallthru
      _
    // Predicated region
    $region26: #{rnn_forward.1} parent=1 // pred_check
      _
    $region27: #{rnn_forward.1} parent=1 // pred_check_branch
      %36 = sbr.rel (0) target = $region29
    $region28: #{rnn_forward.1} parent=1 // pred_region
      %37 = dma.done [#allocation3], 1024
    $region29: #{rnn_forward.1} parent=1 // pred_fallthru
      _
    %v38 = vld [vmem:[%s1] sm:$0xff]
    %v39 = vld [vmem:[%s1 + $0x8] sm:$0xff]
    %v40 = vld [vmem:[%s2] sm:$0xff]
    %v41 = vld [vmem:[%s2 + $0x8] sm:$0xff]
    %v42 = vld [vmem:[%s3] sm:$0x1]
    %v44 = vlaneseq
    %v45 = vshrl.u32 %v44, 7
    %v46 = vsub.s32 0, %v45
    %v47 = vrot.slane %v42, %v46
    %v49 = vld [vmem:[#allocation2] sm:$0x1]
    %v50 = vld [vmem:[#allocation2 + $0x8] sm:$0x1]
    %v51 = vld [vmem:[#allocation2 + $0x10] sm:$0x1]
    %v52 = vld [vmem:[#allocation2 + $0x18] sm:$0x1]
    %v53 = vld [vmem:[#allocation2 + $0x20] sm:$0x1]
    %v54 = vld [vmem:[#allocation2 + $0x28] sm:$0x1]
    %v55 = vld [vmem:[#allocation2 + $0x30] sm:$0x1]
    %v56 = vld [vmem:[#allocation2 + $0x38] sm:$0x1]
    %v65 = vrot.slane %v50, 7
    %vm66 = vcmask 1041409
    %v67 = vsel %vm66, %v65, %v49
    %v68 = vrot.slane %v51, 6
    %vm69 = vcmask 1042434
    %v70 = vsel %vm69, %v68, %v67
    %v71 = vrot.slane %v52, 5
    %vm72 = vcmask 1043459
    %v73 = vsel %vm72, %v71, %v70
    %v74 = vrot.slane %v53, 4
    %vm75 = vcmask 1044484
    %v76 = vsel %vm75, %v74, %v73
    %v77 = vrot.slane %v54, 3
    %vm78 = vcmask 1045509
    %v79 = vsel %vm78, %v77, %v76
    %v80 = vrot.slane %v55, 2
    %vm81 = vcmask 1046534
    %v82 = vsel %vm81, %v80, %v79
    %v83 = vrot.slane %v56, 1
    %vm84 = vcmask 1047559
    %v85 = vsel %vm84, %v83, %v82
    %vm86 = vcmask 130048
    %v87 = vsel %vm86, %v85, 0
    %89 = vmatprep.subr.mxu0 0.0
    %90 = vmatpush1.msra.mxu0 %v38
    %91 = vmatprep.subr.mxu0 0.0
    %92 = vmatpush1.msra.mxu0 %v39
    %93 = vmatprep.subr.mxu0 0.0
    %94 = vmatpush1.msra.mxu0 0.0
    %95 = vmatprep.subr.mxu0 0.0
    %96 = vmatpush1.msra.mxu0 0.0
    %97 = vmatprep.subr.mxu0 0.0
    %98 = vmatpush1.msra.mxu0 0.0
    %99 = vmatprep.subr.mxu0 0.0
    %100 = vmatpush1.msra.mxu0 0.0
    %101 = vmatprep.subr.mxu0 0.0
    %102 = vmatpush1.msra.mxu0 0.0
    %103 = vmatprep.subr.mxu0 0.0
    %104 = vmatpush1.msra.mxu0 0.0
    %105 = vmatprep.subr.mxu0 0.0
    %106 = vmatpush1.msra.mxu0 0.0
    %107 = vmatprep.subr.mxu0 0.0
    %108 = vmatpush1.msra.mxu0 0.0
    %109 = vmatprep.subr.mxu0 0.0
    %110 = vmatpush1.msra.mxu0 0.0
    %111 = vmatprep.subr.mxu0 0.0
    %112 = vmatpush1.msra.mxu0 0.0
    %113 = vmatprep.subr.mxu0 0.0
    %114 = vmatpush1.msra.mxu0 0.0
    %115 = vmatprep.subr.mxu0 0.0
    %116 = vmatpush1.msra.mxu0 0.0
    %117 = vmatprep.subr.mxu0 0.0
    %118 = vmatpush1.msra.mxu0 0.0
    %119 = vmatprep.subr.mxu0 0.0
    %120 = vmatpush1.msra.mxu0 0.0
    %121 = vmatprep.subr.mxu0 0.0
    %122 = vmatpush1.msra.mxu0 0.0
    %123 = vmatprep.subr.mxu0 0.0
    %124 = vmatpush1.msra.mxu0 0.0
    %125 = vmatprep.subr.mxu0 0.0
    %126 = vmatpush1.msra.mxu0 0.0
    %127 = vmatprep.subr.mxu0 0.0
    %128 = vmatpush1.msra.mxu0 0.0
    %129 = vmatprep.subr.mxu0 0.0
    %130 = vmatpush1.msra.mxu0 0.0
    %131 = vmatprep.subr.mxu0 0.0
    %132 = vmatpush1.msra.mxu0 0.0
    %133 = vmatprep.subr.mxu0 0.0
    %134 = vmatpush1.msra.mxu0 0.0
    %135 = vmatprep.subr.mxu0 0.0
    %136 = vmatpush1.msra.mxu0 0.0
    %137 = vmatprep.subr.mxu0 0.0
    %138 = vmatpush1.msra.mxu0 0.0
    %139 = vmatprep.subr.mxu0 0.0
    %140 = vmatpush1.msra.mxu0 0.0
    %141 = vmatprep.subr.mxu0 0.0
    %142 = vmatpush1.msra.mxu0 0.0
    %143 = vmatprep.subr.mxu0 0.0
    %144 = vmatpush1.msra.mxu0 0.0
    %145 = vmatprep.subr.mxu0 0.0
    %146 = vmatpush1.msra.mxu0 0.0
    %147 = vmatprep.subr.mxu0 0.0
    %148 = vmatpush1.msra.mxu0 0.0
    %149 = vmatprep.subr.mxu0 0.0
    %150 = vmatpush1.msra.mxu0 0.0
    %151 = vmatprep.subr.mxu0 0.0
    %152 = vmatpush1.msra.mxu0 0.0
    %153 = vmatprep.mubr.f32.mxu0 0.0
    %154 = vmatmul.mubr.f32.gmra.mrb[0].mxu0 %v87
    %v155 = vpop.f32.mrb[0].mxu0
    %v156 = vadd.f32 %v47, %v155
    %v157 = vpop.f32.mrb[0].mxu0
    %158 = vdwg.mxu0
    %v160 = vsel %vm86, 0.0, 0
    %162 = vmatprep.subr.mxu0 0.0
    %163 = vmatpush1.msra.mxu0 %v40
    %164 = vmatprep.subr.mxu0 0.0
    %165 = vmatpush1.msra.mxu0 %v41
    %166 = vmatprep.subr.mxu0 0.0
    %167 = vmatpush1.msra.mxu0 0.0
    %168 = vmatprep.subr.mxu0 0.0
    %169 = vmatpush1.msra.mxu0 0.0
    %170 = vmatprep.subr.mxu0 0.0
    %171 = vmatpush1.msra.mxu0 0.0
    %172 = vmatprep.subr.mxu0 0.0
    %173 = vmatpush1.msra.mxu0 0.0
    %174 = vmatprep.subr.mxu0 0.0
    %175 = vmatpush1.msra.mxu0 0.0
    %176 = vmatprep.subr.mxu0 0.0
    %177 = vmatpush1.msra.mxu0 0.0
    %178 = vmatprep.subr.mxu0 0.0
    %179 = vmatpush1.msra.mxu0 0.0
    %180 = vmatprep.subr.mxu0 0.0
    %181 = vmatpush1.msra.mxu0 0.0
    %182 = vmatprep.subr.mxu0 0.0
    %183 = vmatpush1.msra.mxu0 0.0
    %184 = vmatprep.subr.mxu0 0.0
    %185 = vmatpush1.msra.mxu0 0.0
    %186 = vmatprep.subr.mxu0 0.0
    %187 = vmatpush1.msra.mxu0 0.0
    %188 = vmatprep.subr.mxu0 0.0
    %189 = vmatpush1.msra.mxu0 0.0
    %190 = vmatprep.subr.mxu0 0.0
    %191 = vmatpush1.msra.mxu0 0.0
    %192 = vmatprep.subr.mxu0 0.0
    %193 = vmatpush1.msra.mxu0 0.0
    %194 = vmatprep.subr.mxu0 0.0
    %195 = vmatpush1.msra.mxu0 0.0
    %196 = vmatprep.subr.mxu0 0.0
    %197 = vmatpush1.msra.mxu0 0.0
    %198 = vmatprep.subr.mxu0 0.0
    %199 = vmatpush1.msra.mxu0 0.0
    %200 = vmatprep.subr.mxu0 0.0
    %201 = vmatpush1.msra.mxu0 0.0
    %202 = vmatprep.subr.mxu0 0.0
    %203 = vmatpush1.msra.mxu0 0.0
    %204 = vmatprep.subr.mxu0 0.0
    %205 = vmatpush1.msra.mxu0 0.0
    %206 = vmatprep.subr.mxu0 0.0
    %207 = vmatpush1.msra.mxu0 0.0
    %208 = vmatprep.subr.mxu0 0.0
    %209 = vmatpush1.msra.mxu0 0.0
    %210 = vmatprep.subr.mxu0 0.0
    %211 = vmatpush1.msra.mxu0 0.0
    %212 = vmatprep.subr.mxu0 0.0
    %213 = vmatpush1.msra.mxu0 0.0
    %214 = vmatprep.subr.mxu0 0.0
    %215 = vmatpush1.msra.mxu0 0.0
    %216 = vmatprep.subr.mxu0 0.0
    %217 = vmatpush1.msra.mxu0 0.0
    %218 = vmatprep.subr.mxu0 0.0
    %219 = vmatpush1.msra.mxu0 0.0
    %220 = vmatprep.subr.mxu0 0.0
    %221 = vmatpush1.msra.mxu0 0.0
    %222 = vmatprep.subr.mxu0 0.0
    %223 = vmatpush1.msra.mxu0 0.0
    %224 = vmatprep.subr.mxu0 0.0
    %225 = vmatpush1.msra.mxu0 0.0
    %226 = vmatprep.mubr.f32.mxu0 0.0
    %227 = vmatmul.mubr.f32.gmra.mrb[0].mxu0 %v160
    %v228 = vpop.f32.mrb[0].mxu0
    %v229 = vadd.f32 0.0, %v228
    %v230 = vpop.f32.mrb[0].mxu0
    %231 = vdwg.mxu0
    %v232 = vadd.f32 %v156, %v229
    %v233 = vxor.u32 %v232, 2147483648
    %v234 = vmul.f32 %v233, 1.442695
    %v235 = vpow.pop %v234
    %v236 = vadd.f32 %v235, 1.0
    %v237 = vrcp.pop %v236
    %v238 = vmul.f32 1.0, %v237
    %v239 = vtanh.pop %v232
    %v240 = vmul.f32 %v238, 0.0
    %242 = vrot.lane.b32.xlu0 %v239, 96
    %v243 = vpop.permute.xlu0 %242
    %v245 = vmul.f32 %v238, %v243
    %247 = vrot.lane.b32.xlu0 %v245, 16
    %v248 = vpop.permute.xlu0 %247
    %v250 = vadd.f32 %v240, %v248
    %v251 = vtanh.pop %v250
    %253 = vrot.lane.b32.xlu0 %v251, 32
    %v254 = vpop.permute.xlu0 %253
    %v256 = vmul.f32 %v238, %v254
    %v257 = vld [vmem:[#allocation2 + $0x1] sm:$0x1]
    %v258 = vld [vmem:[#allocation2 + $0x9] sm:$0x1]
    %v259 = vld [vmem:[#allocation2 + $0x11] sm:$0x1]
    %v260 = vld [vmem:[#allocation2 + $0x19] sm:$0x1]
    %v261 = vld [vmem:[#allocation2 + $0x21] sm:$0x1]
    %v262 = vld [vmem:[#allocation2 + $0x29] sm:$0x1]
    %v263 = vld [vmem:[#allocation2 + $0x31] sm:$0x1]
    %v264 = vld [vmem:[#allocation2 + $0x39] sm:$0x1]
    %v273 = vrot.slane %v258, 7
    %v274 = vsel %vm66, %v273, %v257
    %v275 = vrot.slane %v259, 6
    %v276 = vsel %vm69, %v275, %v274
    %v277 = vrot.slane %v260, 5
    %v278 = vsel %vm72, %v277, %v276
    %v279 = vrot.slane %v261, 4
    %v280 = vsel %vm75, %v279, %v278
    %v281 = vrot.slane %v262, 3
    %v282 = vsel %vm78, %v281, %v280
    %v283 = vrot.slane %v263, 2
    %v284 = vsel %vm81, %v283, %v282
    %v285 = vrot.slane %v264, 1
    %v286 = vsel %vm84, %v285, %v284
    %v287 = vsel %vm86, %v286, 0
    %289 = vmatprep.subr.mxu0 0.0
    %290 = vmatpush1.msra.mxu0 %v38
    %291 = vmatprep.subr.mxu0 0.0
    %292 = vmatpush1.msra.mxu0 %v39
    %293 = vmatprep.subr.mxu0 0.0
    %294 = vmatpush1.msra.mxu0 0.0
    %295 = vmatprep.subr.mxu0 0.0
    %296 = vmatpush1.msra.mxu0 0.0
    %297 = vmatprep.subr.mxu0 0.0
    %298 = vmatpush1.msra.mxu0 0.0
    %299 = vmatprep.subr.mxu0 0.0
    %300 = vmatpush1.msra.mxu0 0.0
    %301 = vmatprep.subr.mxu0 0.0
    %302 = vmatpush1.msra.mxu0 0.0
    %303 = vmatprep.subr.mxu0 0.0
    %304 = vmatpush1.msra.mxu0 0.0
    %305 = vmatprep.subr.mxu0 0.0
    %306 = vmatpush1.msra.mxu0 0.0
    %307 = vmatprep.subr.mxu0 0.0
    %308 = vmatpush1.msra.mxu0 0.0
    %309 = vmatprep.subr.mxu0 0.0
    %310 = vmatpush1.msra.mxu0 0.0
    %311 = vmatprep.subr.mxu0 0.0
    %312 = vmatpush1.msra.mxu0 0.0
    %313 = vmatprep.subr.mxu0 0.0
    %314 = vmatpush1.msra.mxu0 0.0
    %315 = vmatprep.subr.mxu0 0.0
    %316 = vmatpush1.msra.mxu0 0.0
    %317 = vmatprep.subr.mxu0 0.0
    %318 = vmatpush1.msra.mxu0 0.0
    %319 = vmatprep.subr.mxu0 0.0
    %320 = vmatpush1.msra.mxu0 0.0
    %321 = vmatprep.subr.mxu0 0.0
    %322 = vmatpush1.msra.mxu0 0.0
    %323 = vmatprep.subr.mxu0 0.0
    %324 = vmatpush1.msra.mxu0 0.0
    %325 = vmatprep.subr.mxu0 0.0
    %326 = vmatpush1.msra.mxu0 0.0
    %327 = vmatprep.subr.mxu0 0.0
    %328 = vmatpush1.msra.mxu0 0.0
    %329 = vmatprep.subr.mxu0 0.0
    %330 = vmatpush1.msra.mxu0 0.0
    %331 = vmatprep.subr.mxu0 0.0
    %332 = vmatpush1.msra.mxu0 0.0
    %333 = vmatprep.subr.mxu0 0.0
    %334 = vmatpush1.msra.mxu0 0.0
    %335 = vmatprep.subr.mxu0 0.0
    %336 = vmatpush1.msra.mxu0 0.0
    %337 = vmatprep.subr.mxu0 0.0
    %338 = vmatpush1.msra.mxu0 0.0
    %339 = vmatprep.subr.mxu0 0.0
    %340 = vmatpush1.msra.mxu0 0.0
    %341 = vmatprep.subr.mxu0 0.0
    %342 = vmatpush1.msra.mxu0 0.0
    %343 = vmatprep.subr.mxu0 0.0
    %344 = vmatpush1.msra.mxu0 0.0
    %345 = vmatprep.subr.mxu0 0.0
    %346 = vmatpush1.msra.mxu0 0.0
    %347 = vmatprep.subr.mxu0 0.0
    %348 = vmatpush1.msra.mxu0 0.0
    %349 = vmatprep.subr.mxu0 0.0
    %350 = vmatpush1.msra.mxu0 0.0
    %351 = vmatprep.subr.mxu0 0.0
    %352 = vmatpush1.msra.mxu0 0.0
    %353 = vmatprep.mubr.f32.mxu0 0.0
    %354 = vmatmul.mubr.f32.gmra.mrb[0].mxu0 %v287
    %v355 = vpop.f32.mrb[0].mxu0
    %v356 = vadd.f32 %v47, %v355
    %v357 = vpop.f32.mrb[0].mxu0
    %358 = vdwg.mxu0
    %360 = vrot.lane.b32.xlu0 %v256, 80
    %v361 = vpop.permute.xlu0 %360
    %v362 = vsel %vm86, %v361, 0
    %364 = vmatprep.subr.mxu0 0.0
    %365 = vmatpush1.msra.mxu0 %v40
    %366 = vmatprep.subr.mxu0 0.0
    %367 = vmatpush1.msra.mxu0 %v41
    %368 = vmatprep.subr.mxu0 0.0
    %369 = vmatpush1.msra.mxu0 0.0
    %370 = vmatprep.subr.mxu0 0.0
    %371 = vmatpush1.msra.mxu0 0.0
    %372 = vmatprep.subr.mxu0 0.0
    %373 = vmatpush1.msra.mxu0 0.0
    %374 = vmatprep.subr.mxu0 0.0
    %375 = vmatpush1.msra.mxu0 0.0
    %376 = vmatprep.subr.mxu0 0.0
    %377 = vmatpush1.msra.mxu0 0.0
    %378 = vmatprep.subr.mxu0 0.0
    %379 = vmatpush1.msra.mxu0 0.0
    %380 = vmatprep.subr.mxu0 0.0
    %381 = vmatpush1.msra.mxu0 0.0
    %382 = vmatprep.subr.mxu0 0.0
    %383 = vmatpush1.msra.mxu0 0.0
    %384 = vmatprep.subr.mxu0 0.0
    %385 = vmatpush1.msra.mxu0 0.0
    %386 = vmatprep.subr.mxu0 0.0
    %387 = vmatpush1.msra.mxu0 0.0
    %388 = vmatprep.subr.mxu0 0.0
    %389 = vmatpush1.msra.mxu0 0.0
    %390 = vmatprep.subr.mxu0 0.0
    %391 = vmatpush1.msra.mxu0 0.0
    %392 = vmatprep.subr.mxu0 0.0
    %393 = vmatpush1.msra.mxu0 0.0
    %394 = vmatprep.subr.mxu0 0.0
    %395 = vmatpush1.msra.mxu0 0.0
    %396 = vmatprep.subr.mxu0 0.0
    %397 = vmatpush1.msra.mxu0 0.0
    %398 = vmatprep.subr.mxu0 0.0
    %399 = vmatpush1.msra.mxu0 0.0
    %400 = vmatprep.subr.mxu0 0.0
    %401 = vmatpush1.msra.mxu0 0.0
    %402 = vmatprep.subr.mxu0 0.0
    %403 = vmatpush1.msra.mxu0 0.0
    %404 = vmatprep.subr.mxu0 0.0
    %405 = vmatpush1.msra.mxu0 0.0
    %406 = vmatprep.subr.mxu0 0.0
    %407 = vmatpush1.msra.mxu0 0.0
    %408 = vmatprep.subr.mxu0 0.0
    %409 = vmatpush1.msra.mxu0 0.0
    %410 = vmatprep.subr.mxu0 0.0
    %411 = vmatpush1.msra.mxu0 0.0
    %412 = vmatprep.subr.mxu0 0.0
    %413 = vmatpush1.msra.mxu0 0.0
    %414 = vmatprep.subr.mxu0 0.0
    %415 = vmatpush1.msra.mxu0 0.0
    %416 = vmatprep.subr.mxu0 0.0
    %417 = vmatpush1.msra.mxu0 0.0
    %418 = vmatprep.subr.mxu0 0.0
    %419 = vmatpush1.msra.mxu0 0.0
    %420 = vmatprep.subr.mxu0 0.0
    %421 = vmatpush1.msra.mxu0 0.0
    %422 = vmatprep.subr.mxu0 0.0
    %423 = vmatpush1.msra.mxu0 0.0
    %424 = vmatprep.subr.mxu0 0.0
    %425 = vmatpush1.msra.mxu0 0.0
    %426 = vmatprep.subr.mxu0 0.0
    %427 = vmatpush1.msra.mxu0 0.0
    %428 = vmatprep.mubr.f32.mxu0 0.0
    %429 = vmatmul.mubr.f32.gmra.mrb[0].mxu0 %v362
    %v430 = vpop.f32.mrb[0].mxu0
    %v431 = vadd.f32 0.0, %v430
    %v432 = vpop.f32.mrb[0].mxu0
    %433 = vdwg.mxu0
    %v434 = vadd.f32 %v356, %v431
    %v435 = vxor.u32 %v434, 2147483648
    %v436 = vmul.f32 %v435, 1.442695
    %v437 = vpow.pop %v436
    %v438 = vadd.f32 %v437, 1.0
    %v439 = vrcp.pop %v438
    %v440 = vmul.f32 1.0, %v439
    %v441 = vtanh.pop %v434
    %v442 = vmul.f32 %v440, %v250
    %444 = vrot.lane.b32.xlu0 %v441, 96
    %v445 = vpop.permute.xlu0 %444
    %v447 = vmul.f32 %v440, %v445
    %449 = vrot.lane.b32.xlu0 %v447, 16
    %v450 = vpop.permute.xlu0 %449
    %v452 = vadd.f32 %v442, %v450
    %v453 = vtanh.pop %v452
    %455 = vrot.lane.b32.xlu0 %v453, 32
    %v456 = vpop.permute.xlu0 %455
    %v458 = vmul.f32 %v440, %v456
    %v459 = vld [vmem:[#allocation2 + $0x2] sm:$0x1]
    %v460 = vld [vmem:[#allocation2 + $0xa] sm:$0x1]
    %v461 = vld [vmem:[#allocation2 + $0x12] sm:$0x1]
    %v462 = vld [vmem:[#allocation2 + $0x1a] sm:$0x1]
    %v463 = vld [vmem:[#allocation2 + $0x22] sm:$0x1]
    %v464 = vld [vmem:[#allocation2 + $0x2a] sm:$0x1]
    %v465 = vld [vmem:[#allocation2 + $0x32] sm:$0x1]
    %v466 = vld [vmem:[#allocation2 + $0x3a] sm:$0x1]
    %v475 = vrot.slane %v460, 7
    %v476 = vsel %vm66, %v475, %v459
    %v477 = vrot.slane %v461, 6
    %v478 = vsel %vm69, %v477, %v476
    %v479 = vrot.slane %v462, 5
    %v480 = vsel %vm72, %v479, %v478
    %v481 = vrot.slane %v463, 4
    %v482 = vsel %vm75, %v481, %v480
    %v483 = vrot.slane %v464, 3
    %v484 = vsel %vm78, %v483, %v482
    %v485 = vrot.slane %v465, 2
    %v486 = vsel %vm81, %v485, %v484
    %v487 = vrot.slane %v466, 1
    %v488 = vsel %vm84, %v487, %v486
    %v489 = vsel %vm86, %v488, 0
    %491 = vmatprep.subr.mxu0 0.0
    %492 = vmatpush1.msra.mxu0 %v38
    %493 = vmatprep.subr.mxu0 0.0
    %494 = vmatpush1.msra.mxu0 %v39
    %495 = vmatprep.subr.mxu0 0.0
    %496 = vmatpush1.msra.mxu0 0.0
    %497 = vmatprep.subr.mxu0 0.0
    %498 = vmatpush1.msra.mxu0 0.0
    %499 = vmatprep.subr.mxu0 0.0
    %500 = vmatpush1.msra.mxu0 0.0
    %501 = vmatprep.subr.mxu0 0.0
    %502 = vmatpush1.msra.mxu0 0.0
    %503 = vmatprep.subr.mxu0 0.0
    %504 = vmatpush1.msra.mxu0 0.0
    %505 = vmatprep.subr.mxu0 0.0
    %506 = vmatpush1.msra.mxu0 0.0
    %507 = vmatprep.subr.mxu0 0.0
    %508 = vmatpush1.msra.mxu0 0.0
    %509 = vmatprep.subr.mxu0 0.0
    %510 = vmatpush1.msra.mxu0 0.0
    %511 = vmatprep.subr.mxu0 0.0
    %512 = vmatpush1.msra.mxu0 0.0
    %513 = vmatprep.subr.mxu0 0.0
    %514 = vmatpush1.msra.mxu0 0.0
    %515 = vmatprep.subr.mxu0 0.0
    %516 = vmatpush1.msra.mxu0 0.0
    %517 = vmatprep.subr.mxu0 0.0
    %518 = vmatpush1.msra.mxu0 0.0
    %519 = vmatprep.subr.mxu0 0.0
    %520 = vmatpush1.msra.mxu0 0.0
    %521 = vmatprep.subr.mxu0 0.0
    %522 = vmatpush1.msra.mxu0 0.0
    %523 = vmatprep.subr.mxu0 0.0
    %524 = vmatpush1.msra.mxu0 0.0
    %525 = vmatprep.subr.mxu0 0.0
    %526 = vmatpush1.msra.mxu0 0.0
    %527 = vmatprep.subr.mxu0 0.0
    %528 = vmatpush1.msra.mxu0 0.0
    %529 = vmatprep.subr.mxu0 0.0
    %530 = vmatpush1.msra.mxu0 0.0
    %531 = vmatprep.subr.mxu0 0.0
    %532 = vmatpush1.msra.mxu0 0.0
    %533 = vmatprep.subr.mxu0 0.0
    %534 = vmatpush1.msra.mxu0 0.0
    %535 = vmatprep.subr.mxu0 0.0
    %536 = vmatpush1.msra.mxu0 0.0
    %537 = vmatprep.subr.mxu0 0.0
    %538 = vmatpush1.msra.mxu0 0.0
    %539 = vmatprep.subr.mxu0 0.0
    %540 = vmatpush1.msra.mxu0 0.0
    %541 = vmatprep.subr.mxu0 0.0
    %542 = vmatpush1.msra.mxu0 0.0
    %543 = vmatprep.subr.mxu0 0.0
    %544 = vmatpush1.msra.mxu0 0.0
    %545 = vmatprep.subr.mxu0 0.0
    %546 = vmatpush1.msra.mxu0 0.0
    %547 = vmatprep.subr.mxu0 0.0
    %548 = vmatpush1.msra.mxu0 0.0
    %549 = vmatprep.subr.mxu0 0.0
    %550 = vmatpush1.msra.mxu0 0.0
    %551 = vmatprep.subr.mxu0 0.0
    %552 = vmatpush1.msra.mxu0 0.0
    %553 = vmatprep.subr.mxu0 0.0
    %554 = vmatpush1.msra.mxu0 0.0
    %555 = vmatprep.mubr.f32.mxu0 0.0
    %556 = vmatmul.mubr.f32.gmra.mrb[0].mxu0 %v489
    %v557 = vpop.f32.mrb[0].mxu0
    %v558 = vadd.f32 %v47, %v557
    %v559 = vpop.f32.mrb[0].mxu0
    %560 = vdwg.mxu0
    %562 = vrot.lane.b32.xlu0 %v458, 80
    %v563 = vpop.permute.xlu0 %562
    %v564 = vsel %vm86, %v563, 0
    %566 = vmatprep.subr.mxu0 0.0
    %567 = vmatpush1.msra.mxu0 %v40
    %568 = vmatprep.subr.mxu0 0.0
    %569 = vmatpush1.msra.mxu0 %v41
    %570 = vmatprep.subr.mxu0 0.0
    %571 = vmatpush1.msra.mxu0 0.0
    %572 = vmatprep.subr.mxu0 0.0
    %573 = vmatpush1.msra.mxu0 0.0
    %574 = vmatprep.subr.mxu0 0.0
    %575 = vmatpush1.msra.mxu0 0.0
    %576 = vmatprep.subr.mxu0 0.0
    %577 = vmatpush1.msra.mxu0 0.0
    %578 = vmatprep.subr.mxu0 0.0
    %579 = vmatpush1.msra.mxu0 0.0
    %580 = vmatprep.subr.mxu0 0.0
    %581 = vmatpush1.msra.mxu0 0.0
    %582 = vmatprep.subr.mxu0 0.0
    %583 = vmatpush1.msra.mxu0 0.0
    %584 = vmatprep.subr.mxu0 0.0
    %585 = vmatpush1.msra.mxu0 0.0
    %586 = vmatprep.subr.mxu0 0.0
    %587 = vmatpush1.msra.mxu0 0.0
    %588 = vmatprep.subr.mxu0 0.0
    %589 = vmatpush1.msra.mxu0 0.0
    %590 = vmatprep.subr.mxu0 0.0
    %591 = vmatpush1.msra.mxu0 0.0
    %592 = vmatprep.subr.mxu0 0.0
    %593 = vmatpush1.msra.mxu0 0.0
    %594 = vmatprep.subr.mxu0 0.0
    %595 = vmatpush1.msra.mxu0 0.0
    %596 = vmatprep.subr.mxu0 0.0
    %597 = vmatpush1.msra.mxu0 0.0
    %598 = vmatprep.subr.mxu0 0.0
    %599 = vmatpush1.msra.mxu0 0.0
    %600 = vmatprep.subr.mxu0 0.0
    %601 = vmatpush1.msra.mxu0 0.0
    %602 = vmatprep.subr.mxu0 0.0
    %603 = vmatpush1.msra.mxu0 0.0
    %604 = vmatprep.subr.mxu0 0.0
    %605 = vmatpush1.msra.mxu0 0.0
    %606 = vmatprep.subr.mxu0 0.0
    %607 = vmatpush1.msra.mxu0 0.0
    %608 = vmatprep.subr.mxu0 0.0
    %609 = vmatpush1.msra.mxu0 0.0
    %610 = vmatprep.subr.mxu0 0.0
    %611 = vmatpush1.msra.mxu0 0.0
    %612 = vmatprep.subr.mxu0 0.0
    %613 = vmatpush1.msra.mxu0 0.0
    %614 = vmatprep.subr.mxu0 0.0
    %615 = vmatpush1.msra.mxu0 0.0
    %616 = vmatprep.subr.mxu0 0.0
    %617 = vmatpush1.msra.mxu0 0.0
    %618 = vmatprep.subr.mxu0 0.0
    %619 = vmatpush1.msra.mxu0 0.0
    %620 = vmatprep.subr.mxu0 0.0
    %621 = vmatpush1.msra.mxu0 0.0
    %622 = vmatprep.subr.mxu0 0.0
    %623 = vmatpush1.msra.mxu0 0.0
    %624 = vmatprep.subr.mxu0 0.0
    %625 = vmatpush1.msra.mxu0 0.0
    %626 = vmatprep.subr.mxu0 0.0
    %627 = vmatpush1.msra.mxu0 0.0
    %628 = vmatprep.subr.mxu0 0.0
    %629 = vmatpush1.msra.mxu0 0.0
    %630 = vmatprep.mubr.f32.mxu0 0.0
    %631 = vmatmul.mubr.f32.gmra.mrb[0].mxu0 %v564
    %v632 = vpop.f32.mrb[0].mxu0
    %v633 = vadd.f32 0.0, %v632
    %v634 = vpop.f32.mrb[0].mxu0
    %635 = vdwg.mxu0
    %v636 = vadd.f32 %v558, %v633
    %v637 = vxor.u32 %v636, 2147483648
    %v638 = vmul.f32 %v637, 1.442695
    %v639 = vpow.pop %v638
    %v640 = vadd.f32 %v639, 1.0
    %v641 = vrcp.pop %v640
    %v642 = vmul.f32 1.0, %v641
    %v643 = vtanh.pop %v636
    %v644 = vmul.f32 %v642, %v452
    %646 = vrot.lane.b32.xlu0 %v643, 96
    %v647 = vpop.permute.xlu0 %646
    %v649 = vmul.f32 %v642, %v647
    %651 = vrot.lane.b32.xlu0 %v649, 16
    %v652 = vpop.permute.xlu0 %651
    %v654 = vadd.f32 %v644, %v652
    %v655 = vtanh.pop %v654
    %657 = vrot.lane.b32.xlu0 %v655, 32
    %v658 = vpop.permute.xlu0 %657
    %v660 = vmul.f32 %v642, %v658
    %v661 = vld [vmem:[#allocation2 + $0x3] sm:$0x1]
    %v662 = vld [vmem:[#allocation2 + $0xb] sm:$0x1]
    %v663 = vld [vmem:[#allocation2 + $0x13] sm:$0x1]
    %v664 = vld [vmem:[#allocation2 + $0x1b] sm:$0x1]
    %v665 = vld [vmem:[#allocation2 + $0x23] sm:$0x1]
    %v666 = vld [vmem:[#allocation2 + $0x2b] sm:$0x1]
    %v667 = vld [vmem:[#allocation2 + $0x33] sm:$0x1]
    %v668 = vld [vmem:[#allocation2 + $0x3b] sm:$0x1]
    %v677 = vrot.slane %v662, 7
    %v678 = vsel %vm66, %v677, %v661
    %v679 = vrot.slane %v663, 6
    %v680 = vsel %vm69, %v679, %v678
    %v681 = vrot.slane %v664, 5
    %v682 = vsel %vm72, %v681, %v680
    %v683 = vrot.slane %v665, 4
    %v684 = vsel %vm75, %v683, %v682
    %v685 = vrot.slane %v666, 3
    %v686 = vsel %vm78, %v685, %v684
    %v687 = vrot.slane %v667, 2
    %v688 = vsel %vm81, %v687, %v686
    %v689 = vrot.slane %v668, 1
    %v690 = vsel %vm84, %v689, %v688
    %v691 = vsel %vm86, %v690, 0
    %693 = vmatprep.subr.mxu0 0.0
    %694 = vmatpush1.msra.mxu0 %v38
    %695 = vmatprep.subr.mxu0 0.0
    %696 = vmatpush1.msra.mxu0 %v39
    %697 = vmatprep.subr.mxu0 0.0
    %698 = vmatpush1.msra.mxu0 0.0
    %699 = vmatprep.subr.mxu0 0.0
    %700 = vmatpush1.msra.mxu0 0.0
    %701 = vmatprep.subr.mxu0 0.0
    %702 = vmatpush1.msra.mxu0 0.0
    %703 = vmatprep.subr.mxu0 0.0
    %704 = vmatpush1.msra.mxu0 0.0
    %705 = vmatprep.subr.mxu0 0.0
    %706 = vmatpush1.msra.mxu0 0.0
    %707 = vmatprep.subr.mxu0 0.0
    %708 = vmatpush1.msra.mxu0 0.0
    %709 = vmatprep.subr.mxu0 0.0
    %710 = vmatpush1.msra.mxu0 0.0
    %711 = vmatprep.subr.mxu0 0.0
    %712 = vmatpush1.msra.mxu0 0.0
    %713 = vmatprep.subr.mxu0 0.0
    %714 = vmatpush1.msra.mxu0 0.0
    %715 = vmatprep.subr.mxu0 0.0
    %716 = vmatpush1.msra.mxu0 0.0
    %717 = vmatprep.subr.mxu0 0.0
    %718 = vmatpush1.msra.mxu0 0.0
    %719 = vmatprep.subr.mxu0 0.0
    %720 = vmatpush1.msra.mxu0 0.0
    %721 = vmatprep.subr.mxu0 0.0
    %722 = vmatpush1.msra.mxu0 0.0
    %723 = vmatprep.subr.mxu0 0.0
    %724 = vmatpush1.msra.mxu0 0.0
    %725 = vmatprep.subr.mxu0 0.0
    %726 = vmatpush1.msra.mxu0 0.0
    %727 = vmatprep.subr.mxu0 0.0
    %728 = vmatpush1.msra.mxu0 0.0
    %729 = vmatprep.subr.mxu0 0.0
    %730 = vmatpush1.msra.mxu0 0.0
    %731 = vmatprep.subr.mxu0 0.0
    %732 = vmatpush1.msra.mxu0 0.0
    %733 = vmatprep.subr.mxu0 0.0
    %734 = vmatpush1.msra.mxu0 0.0
    %735 = vmatprep.subr.mxu0 0.0
    %736 = vmatpush1.msra.mxu0 0.0
    %737 = vmatprep.subr.mxu0 0.0
    %738 = vmatpush1.msra.mxu0 0.0
    %739 = vmatprep.subr.mxu0 0.0
    %740 = vmatpush1.msra.mxu0 0.0
    %741 = vmatprep.subr.mxu0 0.0
    %742 = vmatpush1.msra.mxu0 0.0
    %743 = vmatprep.subr.mxu0 0.0
    %744 = vmatpush1.msra.mxu0 0.0
    %745 = vmatprep.subr.mxu0 0.0
    %746 = vmatpush1.msra.mxu0 0.0
    %747 = vmatprep.subr.mxu0 0.0
    %748 = vmatpush1.msra.mxu0 0.0
    %749 = vmatprep.subr.mxu0 0.0
    %750 = vmatpush1.msra.mxu0 0.0
    %751 = vmatprep.subr.mxu0 0.0
    %752 = vmatpush1.msra.mxu0 0.0
    %753 = vmatprep.subr.mxu0 0.0
    %754 = vmatpush1.msra.mxu0 0.0
    %755 = vmatprep.subr.mxu0 0.0
    %756 = vmatpush1.msra.mxu0 0.0
    %757 = vmatprep.mubr.f32.mxu0 0.0
    %758 = vmatmul.mubr.f32.gmra.mrb[0].mxu0 %v691
    %v759 = vpop.f32.mrb[0].mxu0
    %v760 = vadd.f32 %v47, %v759
    %v761 = vpop.f32.mrb[0].mxu0
    %762 = vdwg.mxu0
    %764 = vrot.lane.b32.xlu0 %v660, 80
    %v765 = vpop.permute.xlu0 %764
    %v766 = vsel %vm86, %v765, 0
    %768 = vmatprep.subr.mxu0 0.0
    %769 = vmatpush1.msra.mxu0 %v40
    %770 = vmatprep.subr.mxu0 0.0
    %771 = vmatpush1.msra.mxu0 %v41
    %772 = vmatprep.subr.mxu0 0.0
    %773 = vmatpush1.msra.mxu0 0.0
    %774 = vmatprep.subr.mxu0 0.0
    %775 = vmatpush1.msra.mxu0 0.0
    %776 = vmatprep.subr.mxu0 0.0
    %777 = vmatpush1.msra.mxu0 0.0
    %778 = vmatprep.subr.mxu0 0.0
    %779 = vmatpush1.msra.mxu0 0.0
    %780 = vmatprep.subr.mxu0 0.0
    %781 = vmatpush1.msra.mxu0 0.0
    %782 = vmatprep.subr.mxu0 0.0
    %783 = vmatpush1.msra.mxu0 0.0
    %784 = vmatprep.subr.mxu0 0.0
    %785 = vmatpush1.msra.mxu0 0.0
    %786 = vmatprep.subr.mxu0 0.0
    %787 = vmatpush1.msra.mxu0 0.0
    %788 = vmatprep.subr.mxu0 0.0
    %789 = vmatpush1.msra.mxu0 0.0
    %790 = vmatprep.subr.mxu0 0.0
    %791 = vmatpush1.msra.mxu0 0.0
    %792 = vmatprep.subr.mxu0 0.0
    %793 = vmatpush1.msra.mxu0 0.0
    %794 = vmatprep.subr.mxu0 0.0
    %795 = vmatpush1.msra.mxu0 0.0
    %796 = vmatprep.subr.mxu0 0.0
    %797 = vmatpush1.msra.mxu0 0.0
    %798 = vmatprep.subr.mxu0 0.0
    %799 = vmatpush1.msra.mxu0 0.0
    %800 = vmatprep.subr.mxu0 0.0
    %801 = vmatpush1.msra.mxu0 0.0
    %802 = vmatprep.subr.mxu0 0.0
    %803 = vmatpush1.msra.mxu0 0.0
    %804 = vmatprep.subr.mxu0 0.0
    %805 = vmatpush1.msra.mxu0 0.0
    %806 = vmatprep.subr.mxu0 0.0
    %807 = vmatpush1.msra.mxu0 0.0
    %808 = vmatprep.subr.mxu0 0.0
    %809 = vmatpush1.msra.mxu0 0.0
    %810 = vmatprep.subr.mxu0 0.0
    %811 = vmatpush1.msra.mxu0 0.0
    %812 = vmatprep.subr.mxu0 0.0
    %813 = vmatpush1.msra.mxu0 0.0
    %814 = vmatprep.subr.mxu0 0.0
    %815 = vmatpush1.msra.mxu0 0.0
    %816 = vmatprep.subr.mxu0 0.0
    %817 = vmatpush1.msra.mxu0 0.0
    %818 = vmatprep.subr.mxu0 0.0
    %819 = vmatpush1.msra.mxu0 0.0
    %820 = vmatprep.subr.mxu0 0.0
    %821 = vmatpush1.msra.mxu0 0.0
    %822 = vmatprep.subr.mxu0 0.0
    %823 = vmatpush1.msra.mxu0 0.0
    %824 = vmatprep.subr.mxu0 0.0
    %825 = vmatpush1.msra.mxu0 0.0
    %826 = vmatprep.subr.mxu0 0.0
    %827 = vmatpush1.msra.mxu0 0.0
    %828 = vmatprep.subr.mxu0 0.0
    %829 = vmatpush1.msra.mxu0 0.0
    %830 = vmatprep.subr.mxu0 0.0
    %831 = vmatpush1.msra.mxu0 0.0
    %832 = vmatprep.mubr.f32.mxu0 0.0
    %833 = vmatmul.mubr.f32.gmra.mrb[0].mxu0 %v766
    %v834 = vpop.f32.mrb[0].mxu0
    %v835 = vadd.f32 0.0, %v834
    %v836 = vpop.f32.mrb[0].mxu0
    %837 = vdwg.mxu0
    %v838 = vadd.f32 %v760, %v835
    %v839 = vxor.u32 %v838, 2147483648
    %v840 = vmul.f32 %v839, 1.442695
    %v841 = vpow.pop %v840
    %v842 = vadd.f32 %v841, 1.0
    %v843 = vrcp.pop %v842
    %v844 = vmul.f32 1.0, %v843
    %v845 = vtanh.pop %v838
    %v846 = vmul.f32 %v844, %v654
    %848 = vrot.lane.b32.xlu0 %v845, 96
    %v849 = vpop.permute.xlu0 %848
    %v851 = vmul.f32 %v844, %v849
    %853 = vrot.lane.b32.xlu0 %v851, 16
    %v854 = vpop.permute.xlu0 %853
    %v856 = vadd.f32 %v846, %v854
    %v857 = vtanh.pop %v856
    %859 = vrot.lane.b32.xlu0 %v857, 32
    %v860 = vpop.permute.xlu0 %859
    %v862 = vmul.f32 %v844, %v860
    %v863 = vld [vmem:[#allocation2 + $0x4] sm:$0x1]
    %v864 = vld [vmem:[#allocation2 + $0xc] sm:$0x1]
    %v865 = vld [vmem:[#allocation2 + $0x14] sm:$0x1]
    %v866 = vld [vmem:[#allocation2 + $0x1c] sm:$0x1]
    %v867 = vld [vmem:[#allocation2 + $0x24] sm:$0x1]
    %v868 = vld [vmem:[#allocation2 + $0x2c] sm:$0x1]
    %v869 = vld [vmem:[#allocation2 + $0x34] sm:$0x1]
    %v870 = vld [vmem:[#allocation2 + $0x3c] sm:$0x1]
    %v879 = vrot.slane %v864, 7
    %v880 = vsel %vm66, %v879, %v863
    %v881 = vrot.slane %v865, 6
    %v882 = vsel %vm69, %v881, %v880
    %v883 = vrot.slane %v866, 5
    %v884 = vsel %vm72, %v883, %v882
    %v885 = vrot.slane %v867, 4
    %v886 = vsel %vm75, %v885, %v884
    %v887 = vrot.slane %v868, 3
    %v888 = vsel %vm78, %v887, %v886
    %v889 = vrot.slane %v869, 2
    %v890 = vsel %vm81, %v889, %v888
    %v891 = vrot.slane %v870, 1
    %v892 = vsel %vm84, %v891, %v890
    %v893 = vsel %vm86, %v892, 0
    %895 = vmatprep.subr.mxu0 0.0
    %896 = vmatpush1.msra.mxu0 %v38
    %897 = vmatprep.subr.mxu0 0.0
    %898 = vmatpush1.msra.mxu0 %v39
    %899 = vmatprep.subr.mxu0 0.0
    %900 = vmatpush1.msra.mxu0 0.0
    %901 = vmatprep.subr.mxu0 0.0
    %902 = vmatpush1.msra.mxu0 0.0
    %903 = vmatprep.subr.mxu0 0.0
    %904 = vmatpush1.msra.mxu0 0.0
    %905 = vmatprep.subr.mxu0 0.0
    %906 = vmatpush1.msra.mxu0 0.0
    %907 = vmatprep.subr.mxu0 0.0
    %908 = vmatpush1.msra.mxu0 0.0
    %909 = vmatprep.subr.mxu0 0.0
    %910 = vmatpush1.msra.mxu0 0.0
    %911 = vmatprep.subr.mxu0 0.0
    %912 = vmatpush1.msra.mxu0 0.0
    %913 = vmatprep.subr.mxu0 0.0
    %914 = vmatpush1.msra.mxu0 0.0
    %915 = vmatprep.subr.mxu0 0.0
    %916 = vmatpush1.msra.mxu0 0.0
    %917 = vmatprep.subr.mxu0 0.0
    %918 = vmatpush1.msra.mxu0 0.0
    %919 = vmatprep.subr.mxu0 0.0
    %920 = vmatpush1.msra.mxu0 0.0
    %921 = vmatprep.subr.mxu0 0.0
    %922 = vmatpush1.msra.mxu0 0.0
    %923 = vmatprep.subr.mxu0 0.0
    %924 = vmatpush1.msra.mxu0 0.0
    %925 = vmatprep.subr.mxu0 0.0
    %926 = vmatpush1.msra.mxu0 0.0
    %927 = vmatprep.subr.mxu0 0.0
    %928 = vmatpush1.msra.mxu0 0.0
    %929 = vmatprep.subr.mxu0 0.0
    %930 = vmatpush1.msra.mxu0 0.0
    %931 = vmatprep.subr.mxu0 0.0
    %932 = vmatpush1.msra.mxu0 0.0
    %933 = vmatprep.subr.mxu0 0.0
    %934 = vmatpush1.msra.mxu0 0.0
    %935 = vmatprep.subr.mxu0 0.0
    %936 = vmatpush1.msra.mxu0 0.0
    %937 = vmatprep.subr.mxu0 0.0
    %938 = vmatpush1.msra.mxu0 0.0
    %939 = vmatprep.subr.mxu0 0.0
    %940 = vmatpush1.msra.mxu0 0.0
    %941 = vmatprep.subr.mxu0 0.0
    %942 = vmatpush1.msra.mxu0 0.0
    %943 = vmatprep.subr.mxu0 0.0
    %944 = vmatpush1.msra.mxu0 0.0
    %945 = vmatprep.subr.mxu0 0.0
    %946 = vmatpush1.msra.mxu0 0.0
    %947 = vmatprep.subr.mxu0 0.0
    %948 = vmatpush1.msra.mxu0 0.0
    %949 = vmatprep.subr.mxu0 0.0
    %950 = vmatpush1.msra.mxu0 0.0
    %951 = vmatprep.subr.mxu0 0.0
    %952 = vmatpush1.msra.mxu0 0.0
    %953 = vmatprep.subr.mxu0 0.0
    %954 = vmatpush1.msra.mxu0 0.0
    %955 = vmatprep.subr.mxu0 0.0
    %956 = vmatpush1.msra.mxu0 0.0
    %957 = vmatprep.subr.mxu0 0.0
    %958 = vmatpush1.msra.mxu0 0.0
    %959 = vmatprep.mubr.f32.mxu0 0.0
    %960 = vmatmul.mubr.f32.gmra.mrb[0].mxu0 %v893
    %v961 = vpop.f32.mrb[0].mxu0
    %v962 = vadd.f32 %v47, %v961
    %v963 = vpop.f32.mrb[0].mxu0
    %964 = vdwg.mxu0
    %966 = vrot.lane.b32.xlu0 %v862, 80
    %v967 = vpop.permute.xlu0 %966
    %v968 = vsel %vm86, %v967, 0
    %970 = vmatprep.subr.mxu0 0.0
    %971 = vmatpush1.msra.mxu0 %v40
    %972 = vmatprep.subr.mxu0 0.0
    %973 = vmatpush1.msra.mxu0 %v41
    %974 = vmatprep.subr.mxu0 0.0
    %975 = vmatpush1.msra.mxu0 0.0
    %976 = vmatprep.subr.mxu0 0.0
    %977 = vmatpush1.msra.mxu0 0.0
    %978 = vmatprep.subr.mxu0 0.0
    %979 = vmatpush1.msra.mxu0 0.0
    %980 = vmatprep.subr.mxu0 0.0
    %981 = vmatpush1.msra.mxu0 0.0
    %982 = vmatprep.subr.mxu0 0.0
    %983 = vmatpush1.msra.mxu0 0.0
    %984 = vmatprep.subr.mxu0 0.0
    %985 = vmatpush1.msra.mxu0 0.0
    %986 = vmatprep.subr.mxu0 0.0
    %987 = vmatpush1.msra.mxu0 0.0
    %988 = vmatprep.subr.mxu0 0.0
    %989 = vmatpush1.msra.mxu0 0.0
    %990 = vmatprep.subr.mxu0 0.0
    %991 = vmatpush1.msra.mxu0 0.0
    %992 = vmatprep.subr.mxu0 0.0
    %993 = vmatpush1.msra.mxu0 0.0
    %994 = vmatprep.subr.mxu0 0.0
    %995 = vmatpush1.msra.mxu0 0.0
    %996 = vmatprep.subr.mxu0 0.0
    %997 = vmatpush1.msra.mxu0 0.0
    %998 = vmatprep.subr.mxu0 0.0
    %999 = vmatpush1.msra.mxu0 0.0
    %1000 = vmatprep.subr.mxu0 0.0
    %1001 = vmatpush1.msra.mxu0 0.0
    %1002 = vmatprep.subr.mxu0 0.0
    %1003 = vmatpush1.msra.mxu0 0.0
    %1004 = vmatprep.subr.mxu0 0.0
    %1005 = vmatpush1.msra.mxu0 0.0
    %1006 = vmatprep.subr.mxu0 0.0
    %1007 = vmatpush1.msra.mxu0 0.0
    %1008 = vmatprep.subr.mxu0 0.0
    %1009 = vmatpush1.msra.mxu0 0.0
    %1010 = vmatprep.subr.mxu0 0.0
    %1011 = vmatpush1.msra.mxu0 0.0
    %1012 = vmatprep.subr.mxu0 0.0
    %1013 = vmatpush1.msra.mxu0 0.0
    %1014 = vmatprep.subr.mxu0 0.0
    %1015 = vmatpush1.msra.mxu0 0.0
    %1016 = vmatprep.subr.mxu0 0.0
    %1017 = vmatpush1.msra.mxu0 0.0
    %1018 = vmatprep.subr.mxu0 0.0
    %1019 = vmatpush1.msra.mxu0 0.0
    %1020 = vmatprep.subr.mxu0 0.0
    %1021 = vmatpush1.msra.mxu0 0.0
    %1022 = vmatprep.subr.mxu0 0.0
    %1023 = vmatpush1.msra.mxu0 0.0
    %1024 = vmatprep.subr.mxu0 0.0
    %1025 = vmatpush1.msra.mxu0 0.0
    %1026 = vmatprep.subr.mxu0 0.0
    %1027 = vmatpush1.msra.mxu0 0.0
    %1028 = vmatprep.subr.mxu0 0.0
    %1029 = vmatpush1.msra.mxu0 0.0
    %1030 = vmatprep.subr.mxu0 0.0
    %1031 = vmatpush1.msra.mxu0 0.0
    %1032 = vmatprep.subr.mxu0 0.0
    %1033 = vmatpush1.msra.mxu0 0.0
    %1034 = vmatprep.mubr.f32.mxu0 0.0
    %1035 = vmatmul.mubr.f32.gmra.mrb[0].mxu0 %v968
    %v1036 = vpop.f32.mrb[0].mxu0
    %v1037 = vadd.f32 0.0, %v1036
    %v1038 = vpop.f32.mrb[0].mxu0
    %1039 = vdwg.mxu0
    %v1040 = vadd.f32 %v962, %v1037
    %v1041 = vxor.u32 %v1040, 2147483648
    %v1042 = vmul.f32 %v1041, 1.442695
    %v1043 = vpow.pop %v1042
    %v1044 = vadd.f32 %v1043, 1.0
    %v1045 = vrcp.pop %v1044
    %v1046 = vmul.f32 1.0, %v1045
    %v1047 = vtanh.pop %v1040
    %v1048 = vmul.f32 %v1046, %v856
    %1050 = vrot.lane.b32.xlu0 %v1047, 96
    %v1051 = vpop.permute.xlu0 %1050
    %v1053 = vmul.f32 %v1046, %v1051
    %1055 = vrot.lane.b32.xlu0 %v1053, 16
    %v1056 = vpop.permute.xlu0 %1055
    %v1058 = vadd.f32 %v1048, %v1056
    %v1059 = vtanh.pop %v1058
    %1061 = vrot.lane.b32.xlu0 %v1059, 32
    %v1062 = vpop.permute.xlu0 %1061
    %v1064 = vmul.f32 %v1046, %v1062
    %v1065 = vld [vmem:[#allocation2 + $0x5] sm:$0x1]
    %v1066 = vld [vmem:[#allocation2 + $0xd] sm:$0x1]
    %v1067 = vld [vmem:[#allocation2 + $0x15] sm:$0x1]
    %v1068 = vld [vmem:[#allocation2 + $0x1d] sm:$0x1]
    %v1069 = vld [vmem:[#allocation2 + $0x25] sm:$0x1]
    %v1070 = vld [vmem:[#allocation2 + $0x2d] sm:$0x1]
    %v1071 = vld [vmem:[#allocation2 + $0x35] sm:$0x1]
    %v1072 = vld [vmem:[#allocation2 + $0x3d] sm:$0x1]
    %v1081 = vrot.slane %v1066, 7
    %v1082 = vsel %vm66, %v1081, %v1065
    %v1083 = vrot.slane %v1067, 6
    %v1084 = vsel %vm69, %v1083, %v1082
    %v1085 = vrot.slane %v1068, 5
    %v1086 = vsel %vm72, %v1085, %v1084
    %v1087 = vrot.slane %v1069, 4
    %v1088 = vsel %vm75, %v1087, %v1086
    %v1089 = vrot.slane %v1070, 3
    %v1090 = vsel %vm78, %v1089, %v1088
    %v1091 = vrot.slane %v1071, 2
    %v1092 = vsel %vm81, %v1091, %v1090
    %v1093 = vrot.slane %v1072, 1
    %v1094 = vsel %vm84, %v1093, %v1092
    %v1095 = vsel %vm86, %v1094, 0
    %1097 = vmatprep.subr.mxu0 0.0
    %1098 = vmatpush1.msra.mxu0 %v38
    %1099 = vmatprep.subr.mxu0 0.0
    %1100 = vmatpush1.msra.mxu0 %v39
    %1101 = vmatprep.subr.mxu0 0.0
    %1102 = vmatpush1.msra.mxu0 0.0
    %1103 = vmatprep.subr.mxu0 0.0
    %1104 = vmatpush1.msra.mxu0 0.0
    %1105 = vmatprep.subr.mxu0 0.0
    %1106 = vmatpush1.msra.mxu0 0.0
    %1107 = vmatprep.subr.mxu0 0.0
    %1108 = vmatpush1.msra.mxu0 0.0
    %1109 = vmatprep.subr.mxu0 0.0
    %1110 = vmatpush1.msra.mxu0 0.0
    %1111 = vmatprep.subr.mxu0 0.0
    %1112 = vmatpush1.msra.mxu0 0.0
    %1113 = vmatprep.subr.mxu0 0.0
    %1114 = vmatpush1.msra.mxu0 0.0
    %1115 = vmatprep.subr.mxu0 0.0
    %1116 = vmatpush1.msra.mxu0 0.0
    %1117 = vmatprep.subr.mxu0 0.0
    %1118 = vmatpush1.msra.mxu0 0.0
    %1119 = vmatprep.subr.mxu0 0.0
    %1120 = vmatpush1.msra.mxu0 0.0
    %1121 = vmatprep.subr.mxu0 0.0
    %1122 = vmatpush1.msra.mxu0 0.0
    %1123 = vmatprep.subr.mxu0 0.0
    %1124 = vmatpush1.msra.mxu0 0.0
    %1125 = vmatprep.subr.mxu0 0.0
    %1126 = vmatpush1.msra.mxu0 0.0
    %1127 = vmatprep.subr.mxu0 0.0
    %1128 = vmatpush1.msra.mxu0 0.0
    %1129 = vmatprep.subr.mxu0 0.0
    %1130 = vmatpush1.msra.mxu0 0.0
    %1131 = vmatprep.subr.mxu0 0.0
    %1132 = vmatpush1.msra.mxu0 0.0
    %1133 = vmatprep.subr.mxu0 0.0
    %1134 = vmatpush1.msra.mxu0 0.0
    %1135 = vmatprep.subr.mxu0 0.0
    %1136 = vmatpush1.msra.mxu0 0.0
    %1137 = vmatprep.subr.mxu0 0.0
    %1138 = vmatpush1.msra.mxu0 0.0
    %1139 = vmatprep.subr.mxu0 0.0
    %1140 = vmatpush1.msra.mxu0 0.0
    %1141 = vmatprep.subr.mxu0 0.0
    %1142 = vmatpush1.msra.mxu0 0.0
    %1143 = vmatprep.subr.mxu0 0.0
    %1144 = vmatpush1.msra.mxu0 0.0
    %1145 = vmatprep.subr.mxu0 0.0
    %1146 = vmatpush1.msra.mxu0 0.0
    %1147 = vmatprep.subr.mxu0 0.0
    %1148 = vmatpush1.msra.mxu0 0.0
    %1149 = vmatprep.subr.mxu0 0.0
    %1150 = vmatpush1.msra.mxu0 0.0
    %1151 = vmatprep.subr.mxu0 0.0
    %1152 = vmatpush1.msra.mxu0 0.0
    %1153 = vmatprep.subr.mxu0 0.0
    %1154 = vmatpush1.msra.mxu0 0.0
    %1155 = vmatprep.subr.mxu0 0.0
    %1156 = vmatpush1.msra.mxu0 0.0
    %1157 = vmatprep.subr.mxu0 0.0
    %1158 = vmatpush1.msra.mxu0 0.0
    %1159 = vmatprep.subr.mxu0 0.0
    %1160 = vmatpush1.msra.mxu0 0.0
    %1161 = vmatprep.mubr.f32.mxu0 0.0
    %1162 = vmatmul.mubr.f32.gmra.mrb[0].mxu0 %v1095
    %v1163 = vpop.f32.mrb[0].mxu0
    %v1164 = vadd.f32 %v47, %v1163
    %v1165 = vpop.f32.mrb[0].mxu0
    %1166 = vdwg.mxu0
    %1168 = vrot.lane.b32.xlu0 %v1064, 80
    %v1169 = vpop.permute.xlu0 %1168
    %v1170 = vsel %vm86, %v1169, 0
    %1172 = vmatprep.subr.mxu0 0.0
    %1173 = vmatpush1.msra.mxu0 %v40
    %1174 = vmatprep.subr.mxu0 0.0
    %1175 = vmatpush1.msra.mxu0 %v41
    %1176 = vmatprep.subr.mxu0 0.0
    %1177 = vmatpush1.msra.mxu0 0.0
    %1178 = vmatprep.subr.mxu0 0.0
    %1179 = vmatpush1.msra.mxu0 0.0
    %1180 = vmatprep.subr.mxu0 0.0
    %1181 = vmatpush1.msra.mxu0 0.0
    %1182 = vmatprep.subr.mxu0 0.0
    %1183 = vmatpush1.msra.mxu0 0.0
    %1184 = vmatprep.subr.mxu0 0.0
    %1185 = vmatpush1.msra.mxu0 0.0
    %1186 = vmatprep.subr.mxu0 0.0
    %1187 = vmatpush1.msra.mxu0 0.0
    %1188 = vmatprep.subr.mxu0 0.0
    %1189 = vmatpush1.msra.mxu0 0.0
    %1190 = vmatprep.subr.mxu0 0.0
    %1191 = vmatpush1.msra.mxu0 0.0
    %1192 = vmatprep.subr.mxu0 0.0
    %1193 = vmatpush1.msra.mxu0 0.0
    %1194 = vmatprep.subr.mxu0 0.0
    %1195 = vmatpush1.msra.mxu0 0.0
    %1196 = vmatprep.subr.mxu0 0.0
    %1197 = vmatpush1.msra.mxu0 0.0
    %1198 = vmatprep.subr.mxu0 0.0
    %1199 = vmatpush1.msra.mxu0 0.0
    %1200 = vmatprep.subr.mxu0 0.0
    %1201 = vmatpush1.msra.mxu0 0.0
    %1202 = vmatprep.subr.mxu0 0.0
    %1203 = vmatpush1.msra.mxu0 0.0
    %1204 = vmatprep.subr.mxu0 0.0
    %1205 = vmatpush1.msra.mxu0 0.0
    %1206 = vmatprep.subr.mxu0 0.0
    %1207 = vmatpush1.msra.mxu0 0.0
    %1208 = vmatprep.subr.mxu0 0.0
    %1209 = vmatpush1.msra.mxu0 0.0
    %1210 = vmatprep.subr.mxu0 0.0
    %1211 = vmatpush1.msra.mxu0 0.0
    %1212 = vmatprep.subr.mxu0 0.0
    %1213 = vmatpush1.msra.mxu0 0.0
    %1214 = vmatprep.subr.mxu0 0.0
    %1215 = vmatpush1.msra.mxu0 0.0
    %1216 = vmatprep.subr.mxu0 0.0
    %1217 = vmatpush1.msra.mxu0 0.0
    %1218 = vmatprep.subr.mxu0 0.0
    %1219 = vmatpush1.msra.mxu0 0.0
    %1220 = vmatprep.subr.mxu0 0.0
    %1221 = vmatpush1.msra.mxu0 0.0
    %1222 = vmatprep.subr.mxu0 0.0
    %1223 = vmatpush1.msra.mxu0 0.0
    %1224 = vmatprep.subr.mxu0 0.0
    %1225 = vmatpush1.msra.mxu0 0.0
    %1226 = vmatprep.subr.mxu0 0.0
    %1227 = vmatpush1.msra.mxu0 0.0
    %1228 = vmatprep.subr.mxu0 0.0
    %1229 = vmatpush1.msra.mxu0 0.0
    %1230 = vmatprep.subr.mxu0 0.0
    %1231 = vmatpush1.msra.mxu0 0.0
    %1232 = vmatprep.subr.mxu0 0.0
    %1233 = vmatpush1.msra.mxu0 0.0
    %1234 = vmatprep.subr.mxu0 0.0
    %1235 = vmatpush1.msra.mxu0 0.0
    %1236 = vmatprep.mubr.f32.mxu0 0.0
    %1237 = vmatmul.mubr.f32.gmra.mrb[0].mxu0 %v1170
    %v1238 = vpop.f32.mrb[0].mxu0
    %v1239 = vadd.f32 0.0, %v1238
    %v1240 = vpop.f32.mrb[0].mxu0
    %1241 = vdwg.mxu0
    %v1242 = vadd.f32 %v1164, %v1239
    %v1243 = vxor.u32 %v1242, 2147483648
    %v1244 = vmul.f32 %v1243, 1.442695
    %v1245 = vpow.pop %v1244
    %v1246 = vadd.f32 %v1245, 1.0
    %v1247 = vrcp.pop %v1246
    %v1248 = vmul.f32 1.0, %v1247
    %v1249 = vtanh.pop %v1242
    %v1250 = vmul.f32 %v1248, %v1058
    %1252 = vrot.lane.b32.xlu0 %v1249, 96
    %v1253 = vpop.permute.xlu0 %1252
    %v1255 = vmul.f32 %v1248, %v1253
    %1257 = vrot.lane.b32.xlu0 %v1255, 16
    %v1258 = vpop.permute.xlu0 %1257
    %v1260 = vadd.f32 %v1250, %v1258
    %v1261 = vtanh.pop %v1260
    %1263 = vrot.lane.b32.xlu0 %v1261, 32
    %v1264 = vpop.permute.xlu0 %1263
    %v1266 = vmul.f32 %v1248, %v1264
    %v1267 = vld [vmem:[#allocation2 + $0x6] sm:$0x1]
    %v1268 = vld [vmem:[#allocation2 + $0xe] sm:$0x1]
    %v1269 = vld [vmem:[#allocation2 + $0x16] sm:$0x1]
    %v1270 = vld [vmem:[#allocation2 + $0x1e] sm:$0x1]
    %v1271 = vld [vmem:[#allocation2 + $0x26] sm:$0x1]
    %v1272 = vld [vmem:[#allocation2 + $0x2e] sm:$0x1]
    %v1273 = vld [vmem:[#allocation2 + $0x36] sm:$0x1]
    %v1274 = vld [vmem:[#allocation2 + $0x3e] sm:$0x1]
    %v1283 = vrot.slane %v1268, 7
    %v1284 = vsel %vm66, %v1283, %v1267
    %v1285 = vrot.slane %v1269, 6
    %v1286 = vsel %vm69, %v1285, %v1284
    %v1287 = vrot.slane %v1270, 5
    %v1288 = vsel %vm72, %v1287, %v1286
    %v1289 = vrot.slane %v1271, 4
    %v1290 = vsel %vm75, %v1289, %v1288
    %v1291 = vrot.slane %v1272, 3
    %v1292 = vsel %vm78, %v1291, %v1290
    %v1293 = vrot.slane %v1273, 2
    %v1294 = vsel %vm81, %v1293, %v1292
    %v1295 = vrot.slane %v1274, 1
    %v1296 = vsel %vm84, %v1295, %v1294
    %v1297 = vsel %vm86, %v1296, 0
    %1299 = vmatprep.subr.mxu0 0.0
    %1300 = vmatpush1.msra.mxu0 %v38
    %1301 = vmatprep.subr.mxu0 0.0
    %1302 = vmatpush1.msra.mxu0 %v39
    %1303 = vmatprep.subr.mxu0 0.0
    %1304 = vmatpush1.msra.mxu0 0.0
    %1305 = vmatprep.subr.mxu0 0.0
    %1306 = vmatpush1.msra.mxu0 0.0
    %1307 = vmatprep.subr.mxu0 0.0
    %1308 = vmatpush1.msra.mxu0 0.0
    %1309 = vmatprep.subr.mxu0 0.0
    %1310 = vmatpush1.msra.mxu0 0.0
    %1311 = vmatprep.subr.mxu0 0.0
    %1312 = vmatpush1.msra.mxu0 0.0
    %1313 = vmatprep.subr.mxu0 0.0
    %1314 = vmatpush1.msra.mxu0 0.0
    %1315 = vmatprep.subr.mxu0 0.0
    %1316 = vmatpush1.msra.mxu0 0.0
    %1317 = vmatprep.subr.mxu0 0.0
    %1318 = vmatpush1.msra.mxu0 0.0
    %1319 = vmatprep.subr.mxu0 0.0
    %1320 = vmatpush1.msra.mxu0 0.0
    %1321 = vmatprep.subr.mxu0 0.0
    %1322 = vmatpush1.msra.mxu0 0.0
    %1323 = vmatprep.subr.mxu0 0.0
    %1324 = vmatpush1.msra.mxu0 0.0
    %1325 = vmatprep.subr.mxu0 0.0
    %1326 = vmatpush1.msra.mxu0 0.0
    %1327 = vmatprep.subr.mxu0 0.0
    %1328 = vmatpush1.msra.mxu0 0.0
    %1329 = vmatprep.subr.mxu0 0.0
    %1330 = vmatpush1.msra.mxu0 0.0
    %1331 = vmatprep.subr.mxu0 0.0
    %1332 = vmatpush1.msra.mxu0 0.0
    %1333 = vmatprep.subr.mxu0 0.0
    %1334 = vmatpush1.msra.mxu0 0.0
    %1335 = vmatprep.subr.mxu0 0.0
    %1336 = vmatpush1.msra.mxu0 0.0
    %1337 = vmatprep.subr.mxu0 0.0
    %1338 = vmatpush1.msra.mxu0 0.0
    %1339 = vmatprep.subr.mxu0 0.0
    %1340 = vmatpush1.msra.mxu0 0.0
    %1341 = vmatprep.subr.mxu0 0.0
    %1342 = vmatpush1.msra.mxu0 0.0
    %1343 = vmatprep.subr.mxu0 0.0
    %1344 = vmatpush1.msra.mxu0 0.0
    %1345 = vmatprep.subr.mxu0 0.0
    %1346 = vmatpush1.msra.mxu0 0.0
    %1347 = vmatprep.subr.mxu0 0.0
    %1348 = vmatpush1.msra.mxu0 0.0
    %1349 = vmatprep.subr.mxu0 0.0
    %1350 = vmatpush1.msra.mxu0 0.0
    %1351 = vmatprep.subr.mxu0 0.0
    %1352 = vmatpush1.msra.mxu0 0.0
    %1353 = vmatprep.subr.mxu0 0.0
    %1354 = vmatpush1.msra.mxu0 0.0
    %1355 = vmatprep.subr.mxu0 0.0
    %1356 = vmatpush1.msra.mxu0 0.0
    %1357 = vmatprep.subr.mxu0 0.0
    %1358 = vmatpush1.msra.mxu0 0.0
    %1359 = vmatprep.subr.mxu0 0.0
    %1360 = vmatpush1.msra.mxu0 0.0
    %1361 = vmatprep.subr.mxu0 0.0
    %1362 = vmatpush1.msra.mxu0 0.0
    %1363 = vmatprep.mubr.f32.mxu0 0.0
    %1364 = vmatmul.mubr.f32.gmra.mrb[0].mxu0 %v1297
    %v1365 = vpop.f32.mrb[0].mxu0
    %v1366 = vadd.f32 %v47, %v1365
    %v1367 = vpop.f32.mrb[0].mxu0
    %1368 = vdwg.mxu0
    %1370 = vrot.lane.b32.xlu0 %v1266, 80
    %v1371 = vpop.permute.xlu0 %1370
    %v1372 = vsel %vm86, %v1371, 0
    %1374 = vmatprep.subr.mxu0 0.0
    %1375 = vmatpush1.msra.mxu0 %v40
    %1376 = vmatprep.subr.mxu0 0.0
    %1377 = vmatpush1.msra.mxu0 %v41
    %1378 = vmatprep.subr.mxu0 0.0
    %1379 = vmatpush1.msra.mxu0 0.0
    %1380 = vmatprep.subr.mxu0 0.0
    %1381 = vmatpush1.msra.mxu0 0.0
    %1382 = vmatprep.subr.mxu0 0.0
    %1383 = vmatpush1.msra.mxu0 0.0
    %1384 = vmatprep.subr.mxu0 0.0
    %1385 = vmatpush1.msra.mxu0 0.0
    %1386 = vmatprep.subr.mxu0 0.0
    %1387 = vmatpush1.msra.mxu0 0.0
    %1388 = vmatprep.subr.mxu0 0.0
    %1389 = vmatpush1.msra.mxu0 0.0
    %1390 = vmatprep.subr.mxu0 0.0
    %1391 = vmatpush1.msra.mxu0 0.0
    %1392 = vmatprep.subr.mxu0 0.0
    %1393 = vmatpush1.msra.mxu0 0.0
    %1394 = vmatprep.subr.mxu0 0.0
    %1395 = vmatpush1.msra.mxu0 0.0
    %1396 = vmatprep.subr.mxu0 0.0
    %1397 = vmatpush1.msra.mxu0 0.0
    %1398 = vmatprep.subr.mxu0 0.0
    %1399 = vmatpush1.msra.mxu0 0.0
    %1400 = vmatprep.subr.mxu0 0.0
    %1401 = vmatpush1.msra.mxu0 0.0
    %1402 = vmatprep.subr.mxu0 0.0
    %1403 = vmatpush1.msra.mxu0 0.0
    %1404 = vmatprep.subr.mxu0 0.0
    %1405 = vmatpush1.msra.mxu0 0.0
    %1406 = vmatprep.subr.mxu0 0.0
    %1407 = vmatpush1.msra.mxu0 0.0
    %1408 = vmatprep.subr.mxu0 0.0
    %1409 = vmatpush1.msra.mxu0 0.0
    %1410 = vmatprep.subr.mxu0 0.0
    %1411 = vmatpush1.msra.mxu0 0.0
    %1412 = vmatprep.subr.mxu0 0.0
    %1413 = vmatpush1.msra.mxu0 0.0
    %1414 = vmatprep.subr.mxu0 0.0
    %1415 = vmatpush1.msra.mxu0 0.0
    %1416 = vmatprep.subr.mxu0 0.0
    %1417 = vmatpush1.msra.mxu0 0.0
    %1418 = vmatprep.subr.mxu0 0.0
    %1419 = vmatpush1.msra.mxu0 0.0
    %1420 = vmatprep.subr.mxu0 0.0
    %1421 = vmatpush1.msra.mxu0 0.0
    %1422 = vmatprep.subr.mxu0 0.0
    %1423 = vmatpush1.msra.mxu0 0.0
    %1424 = vmatprep.subr.mxu0 0.0
    %1425 = vmatpush1.msra.mxu0 0.0
    %1426 = vmatprep.subr.mxu0 0.0
    %1427 = vmatpush1.msra.mxu0 0.0
    %1428 = vmatprep.subr.mxu0 0.0
    %1429 = vmatpush1.msra.mxu0 0.0
    %1430 = vmatprep.subr.mxu0 0.0
    %1431 = vmatpush1.msra.mxu0 0.0
    %1432 = vmatprep.subr.mxu0 0.0
    %1433 = vmatpush1.msra.mxu0 0.0
    %1434 = vmatprep.subr.mxu0 0.0
    %1435 = vmatpush1.msra.mxu0 0.0
    %1436 = vmatprep.subr.mxu0 0.0
    %1437 = vmatpush1.msra.mxu0 0.0
    %1438 = vmatprep.mubr.f32.mxu0 0.0
    %1439 = vmatmul.mubr.f32.gmra.mrb[0].mxu0 %v1372
    %v1440 = vpop.f32.mrb[0].mxu0
    %v1441 = vadd.f32 0.0, %v1440
    %v1442 = vpop.f32.mrb[0].mxu0
    %1443 = vdwg.mxu0
    %v1444 = vadd.f32 %v1366, %v1441
    %v1445 = vxor.u32 %v1444, 2147483648
    %v1446 = vmul.f32 %v1445, 1.442695
    %v1447 = vpow.pop %v1446
    %v1448 = vadd.f32 %v1447, 1.0
    %v1449 = vrcp.pop %v1448
    %v1450 = vmul.f32 1.0, %v1449
    %v1451 = vtanh.pop %v1444
    %v1452 = vmul.f32 %v1450, %v1260
    %1454 = vrot.lane.b32.xlu0 %v1451, 96
    %v1455 = vpop.permute.xlu0 %1454
    %v1457 = vmul.f32 %v1450, %v1455
    %1459 = vrot.lane.b32.xlu0 %v1457, 16
    %v1460 = vpop.permute.xlu0 %1459
    %v1462 = vadd.f32 %v1452, %v1460
    %v1463 = vtanh.pop %v1462
    %1465 = vrot.lane.b32.xlu0 %v1463, 32
    %v1466 = vpop.permute.xlu0 %1465
    %v1468 = vmul.f32 %v1450, %v1466
    %v1469 = vld [vmem:[#allocation2 + $0x7] sm:$0x1]
    %v1470 = vld [vmem:[#allocation2 + $0xf] sm:$0x1]
    %v1471 = vld [vmem:[#allocation2 + $0x17] sm:$0x1]
    %v1472 = vld [vmem:[#allocation2 + $0x1f] sm:$0x1]
    %v1473 = vld [vmem:[#allocation2 + $0x27] sm:$0x1]
    %v1474 = vld [vmem:[#allocation2 + $0x2f] sm:$0x1]
    %v1475 = vld [vmem:[#allocation2 + $0x37] sm:$0x1]
    %v1476 = vld [vmem:[#allocation2 + $0x3f] sm:$0x1]
    %v1485 = vrot.slane %v1470, 7
    %v1486 = vsel %vm66, %v1485, %v1469
    %v1487 = vrot.slane %v1471, 6
    %v1488 = vsel %vm69, %v1487, %v1486
    %v1489 = vrot.slane %v1472, 5
    %v1490 = vsel %vm72, %v1489, %v1488
    %v1491 = vrot.slane %v1473, 4
    %v1492 = vsel %vm75, %v1491, %v1490
    %v1493 = vrot.slane %v1474, 3
    %v1494 = vsel %vm78, %v1493, %v1492
    %v1495 = vrot.slane %v1475, 2
    %v1496 = vsel %vm81, %v1495, %v1494
    %v1497 = vrot.slane %v1476, 1
    %v1498 = vsel %vm84, %v1497, %v1496
    %v1499 = vsel %vm86, %v1498, 0
    %1501 = vmatprep.subr.mxu0 0.0
    %1502 = vmatpush1.msra.mxu0 %v38
    %1503 = vmatprep.subr.mxu0 0.0
    %1504 = vmatpush1.msra.mxu0 %v39
    %1505 = vmatprep.subr.mxu0 0.0
    %1506 = vmatpush1.msra.mxu0 0.0
    %1507 = vmatprep.subr.mxu0 0.0
    %1508 = vmatpush1.msra.mxu0 0.0
    %1509 = vmatprep.subr.mxu0 0.0
    %1510 = vmatpush1.msra.mxu0 0.0
    %1511 = vmatprep.subr.mxu0 0.0
    %1512 = vmatpush1.msra.mxu0 0.0
    %1513 = vmatprep.subr.mxu0 0.0
    %1514 = vmatpush1.msra.mxu0 0.0
    %1515 = vmatprep.subr.mxu0 0.0
    %1516 = vmatpush1.msra.mxu0 0.0
    %1517 = vmatprep.subr.mxu0 0.0
    %1518 = vmatpush1.msra.mxu0 0.0
    %1519 = vmatprep.subr.mxu0 0.0
    %1520 = vmatpush1.msra.mxu0 0.0
    %1521 = vmatprep.subr.mxu0 0.0
    %1522 = vmatpush1.msra.mxu0 0.0
    %1523 = vmatprep.subr.mxu0 0.0
    %1524 = vmatpush1.msra.mxu0 0.0
    %1525 = vmatprep.subr.mxu0 0.0
    %1526 = vmatpush1.msra.mxu0 0.0
    %1527 = vmatprep.subr.mxu0 0.0
    %1528 = vmatpush1.msra.mxu0 0.0
    %1529 = vmatprep.subr.mxu0 0.0
    %1530 = vmatpush1.msra.mxu0 0.0
    %1531 = vmatprep.subr.mxu0 0.0
    %1532 = vmatpush1.msra.mxu0 0.0
    %1533 = vmatprep.subr.mxu0 0.0
    %1534 = vmatpush1.msra.mxu0 0.0
    %1535 = vmatprep.subr.mxu0 0.0
    %1536 = vmatpush1.msra.mxu0 0.0
    %1537 = vmatprep.subr.mxu0 0.0
    %1538 = vmatpush1.msra.mxu0 0.0
    %1539 = vmatprep.subr.mxu0 0.0
    %1540 = vmatpush1.msra.mxu0 0.0
    %1541 = vmatprep.subr.mxu0 0.0
    %1542 = vmatpush1.msra.mxu0 0.0
    %1543 = vmatprep.subr.mxu0 0.0
    %1544 = vmatpush1.msra.mxu0 0.0
    %1545 = vmatprep.subr.mxu0 0.0
    %1546 = vmatpush1.msra.mxu0 0.0
    %1547 = vmatprep.subr.mxu0 0.0
    %1548 = vmatpush1.msra.mxu0 0.0
    %1549 = vmatprep.subr.mxu0 0.0
    %1550 = vmatpush1.msra.mxu0 0.0
    %1551 = vmatprep.subr.mxu0 0.0
    %1552 = vmatpush1.msra.mxu0 0.0
    %1553 = vmatprep.subr.mxu0 0.0
    %1554 = vmatpush1.msra.mxu0 0.0
    %1555 = vmatprep.subr.mxu0 0.0
    %1556 = vmatpush1.msra.mxu0 0.0
    %1557 = vmatprep.subr.mxu0 0.0
    %1558 = vmatpush1.msra.mxu0 0.0
    %1559 = vmatprep.subr.mxu0 0.0
    %1560 = vmatpush1.msra.mxu0 0.0
    %1561 = vmatprep.subr.mxu0 0.0
    %1562 = vmatpush1.msra.mxu0 0.0
    %1563 = vmatprep.subr.mxu0 0.0
    %1564 = vmatpush1.msra.mxu0 0.0
    %1565 = vmatprep.mubr.f32.mxu0 0.0
    %1566 = vmatmul.mubr.f32.gmra.mrb[0].mxu0 %v1499
    %v1567 = vpop.f32.mrb[0].mxu0
    %v1568 = vadd.f32 %v47, %v1567
    %v1569 = vpop.f32.mrb[0].mxu0
    %1570 = vdwg.mxu0
    %1572 = vrot.lane.b32.xlu0 %v1468, 80
    %v1573 = vpop.permute.xlu0 %1572
    %v1574 = vsel %vm86, %v1573, 0
    %1576 = vmatprep.subr.mxu0 0.0
    %1577 = vmatpush1.msra.mxu0 %v40
    %1578 = vmatprep.subr.mxu0 0.0
    %1579 = vmatpush1.msra.mxu0 %v41
    %1580 = vmatprep.subr.mxu0 0.0
    %1581 = vmatpush1.msra.mxu0 0.0
    %1582 = vmatprep.subr.mxu0 0.0
    %1583 = vmatpush1.msra.mxu0 0.0
    %1584 = vmatprep.subr.mxu0 0.0
    %1585 = vmatpush1.msra.mxu0 0.0
    %1586 = vmatprep.subr.mxu0 0.0
    %1587 = vmatpush1.msra.mxu0 0.0
    %1588 = vmatprep.subr.mxu0 0.0
    %1589 = vmatpush1.msra.mxu0 0.0
    %1590 = vmatprep.subr.mxu0 0.0
    %1591 = vmatpush1.msra.mxu0 0.0
    %1592 = vmatprep.subr.mxu0 0.0
    %1593 = vmatpush1.msra.mxu0 0.0
    %1594 = vmatprep.subr.mxu0 0.0
    %1595 = vmatpush1.msra.mxu0 0.0
    %1596 = vmatprep.subr.mxu0 0.0
    %1597 = vmatpush1.msra.mxu0 0.0
    %1598 = vmatprep.subr.mxu0 0.0
    %1599 = vmatpush1.msra.mxu0 0.0
    %1600 = vmatprep.subr.mxu0 0.0
    %1601 = vmatpush1.msra.mxu0 0.0
    %1602 = vmatprep.subr.mxu0 0.0
    %1603 = vmatpush1.msra.mxu0 0.0
    %1604 = vmatprep.subr.mxu0 0.0
    %1605 = vmatpush1.msra.mxu0 0.0
    %1606 = vmatprep.subr.mxu0 0.0
    %1607 = vmatpush1.msra.mxu0 0.0
    %1608 = vmatprep.subr.mxu0 0.0
    %1609 = vmatpush1.msra.mxu0 0.0
    %1610 = vmatprep.subr.mxu0 0.0
    %1611 = vmatpush1.msra.mxu0 0.0
    %1612 = vmatprep.subr.mxu0 0.0
    %1613 = vmatpush1.msra.mxu0 0.0
    %1614 = vmatprep.subr.mxu0 0.0
    %1615 = vmatpush1.msra.mxu0 0.0
    %1616 = vmatprep.subr.mxu0 0.0
    %1617 = vmatpush1.msra.mxu0 0.0
    %1618 = vmatprep.subr.mxu0 0.0
    %1619 = vmatpush1.msra.mxu0 0.0
    %1620 = vmatprep.subr.mxu0 0.0
    %1621 = vmatpush1.msra.mxu0 0.0
    %1622 = vmatprep.subr.mxu0 0.0
    %1623 = vmatpush1.msra.mxu0 0.0
    %1624 = vmatprep.subr.mxu0 0.0
    %1625 = vmatpush1.msra.mxu0 0.0
    %1626 = vmatprep.subr.mxu0 0.0
    %1627 = vmatpush1.msra.mxu0 0.0
    %1628 = vmatprep.subr.mxu0 0.0
    %1629 = vmatpush1.msra.mxu0 0.0
    %1630 = vmatprep.subr.mxu0 0.0
    %1631 = vmatpush1.msra.mxu0 0.0
    %1632 = vmatprep.subr.mxu0 0.0
    %1633 = vmatpush1.msra.mxu0 0.0
    %1634 = vmatprep.subr.mxu0 0.0
    %1635 = vmatpush1.msra.mxu0 0.0
    %1636 = vmatprep.subr.mxu0 0.0
    %1637 = vmatpush1.msra.mxu0 0.0
    %1638 = vmatprep.subr.mxu0 0.0
    %1639 = vmatpush1.msra.mxu0 0.0
    %1640 = vmatprep.mubr.f32.mxu0 0.0
    %1641 = vmatmul.mubr.f32.gmra.mrb[0].mxu0 %v1574
    %v1642 = vpop.f32.mrb[0].mxu0
    %v1643 = vadd.f32 0.0, %v1642
    %v1644 = vpop.f32.mrb[0].mxu0
    %1645 = vdwg.mxu0
    %v1646 = vadd.f32 %v1568, %v1643
    %v1647 = vxor.u32 %v1646, 2147483648
    %v1648 = vmul.f32 %v1647, 1.442695
    %v1649 = vpow.pop %v1648
    %v1650 = vadd.f32 %v1649, 1.0
    %v1651 = vrcp.pop %v1650
    %v1652 = vmul.f32 1.0, %v1651
    %v1653 = vtanh.pop %v1646
    %v1654 = vmul.f32 %v1652, %v1462
    %1656 = vrot.lane.b32.xlu0 %v1653, 96
    %v1657 = vpop.permute.xlu0 %1656
    %v1659 = vmul.f32 %v1652, %v1657
    %1661 = vrot.lane.b32.xlu0 %v1659, 16
    %v1662 = vpop.permute.xlu0 %1661
    %v1664 = vadd.f32 %v1654, %v1662
    %v1665 = vtanh.pop %v1664
    %1667 = vrot.lane.b32.xlu0 %v1665, 32
    %v1668 = vpop.permute.xlu0 %1667
    %v1670 = vmul.f32 %v1652, %v1668
    %v1671 = vld [vmem:[%s4] sm:$0xff]
    %v1672 = vld [vmem:[%s4 + $0x8] sm:$0xff]
    %v1673 = vld [vmem:[%s5] sm:$0x1]
    %v1675 = vlaneseq
    %v1676 = vshrl.u32 %v1675, 7
    %v1677 = vsub.s32 0, %v1676
    %v1678 = vrot.slane %v1673, %v1677
    %1681 = vrot.lane.b32.xlu0 %v1670, 80
    %v1682 = vpop.permute.xlu0 %1681
    %v1683 = vsel %vm86, %v1682, 0
    %1685 = vmatprep.subr.mxu0 0.0
    %1686 = vmatpush1.msra.mxu0 %v1671
    %1687 = vmatprep.subr.mxu0 0.0
    %1688 = vmatpush1.msra.mxu0 %v1672
    %1689 = vmatprep.subr.mxu0 0.0
    %1690 = vmatpush1.msra.mxu0 0.0
    %1691 = vmatprep.subr.mxu0 0.0
    %1692 = vmatpush1.msra.mxu0 0.0
    %1693 = vmatprep.subr.mxu0 0.0
    %1694 = vmatpush1.msra.mxu0 0.0
    %1695 = vmatprep.subr.mxu0 0.0
    %1696 = vmatpush1.msra.mxu0 0.0
    %1697 = vmatprep.subr.mxu0 0.0
    %1698 = vmatpush1.msra.mxu0 0.0
    %1699 = vmatprep.subr.mxu0 0.0
    %1700 = vmatpush1.msra.mxu0 0.0
    %1701 = vmatprep.subr.mxu0 0.0
    %1702 = vmatpush1.msra.mxu0 0.0
    %1703 = vmatprep.subr.mxu0 0.0
    %1704 = vmatpush1.msra.mxu0 0.0
    %1705 = vmatprep.subr.mxu0 0.0
    %1706 = vmatpush1.msra.mxu0 0.0
    %1707 = vmatprep.subr.mxu0 0.0
    %1708 = vmatpush1.msra.mxu0 0.0
    %1709 = vmatprep.subr.mxu0 0.0
    %1710 = vmatpush1.msra.mxu0 0.0
    %1711 = vmatprep.subr.mxu0 0.0
    %1712 = vmatpush1.msra.mxu0 0.0
    %1713 = vmatprep.subr.mxu0 0.0
    %1714 = vmatpush1.msra.mxu0 0.0
    %1715 = vmatprep.subr.mxu0 0.0
    %1716 = vmatpush1.msra.mxu0 0.0
    %1717 = vmatprep.subr.mxu0 0.0
    %1718 = vmatpush1.msra.mxu0 0.0
    %1719 = vmatprep.subr.mxu0 0.0
    %1720 = vmatpush1.msra.mxu0 0.0
    %1721 = vmatprep.subr.mxu0 0.0
    %1722 = vmatpush1.msra.mxu0 0.0
    %1723 = vmatprep.subr.mxu0 0.0
    %1724 = vmatpush1.msra.mxu0 0.0
    %1725 = vmatprep.subr.mxu0 0.0
    %1726 = vmatpush1.msra.mxu0 0.0
    %1727 = vmatprep.subr.mxu0 0.0
    %1728 = vmatpush1.msra.mxu0 0.0
    %1729 = vmatprep.subr.mxu0 0.0
    %1730 = vmatpush1.msra.mxu0 0.0
    %1731 = vmatprep.subr.mxu0 0.0
    %1732 = vmatpush1.msra.mxu0 0.0
    %1733 = vmatprep.subr.mxu0 0.0
    %1734 = vmatpush1.msra.mxu0 0.0
    %1735 = vmatprep.subr.mxu0 0.0
    %1736 = vmatpush1.msra.mxu0 0.0
    %1737 = vmatprep.subr.mxu0 0.0
    %1738 = vmatpush1.msra.mxu0 0.0
    %1739 = vmatprep.subr.mxu0 0.0
    %1740 = vmatpush1.msra.mxu0 0.0
    %1741 = vmatprep.subr.mxu0 0.0
    %1742 = vmatpush1.msra.mxu0 0.0
    %1743 = vmatprep.subr.mxu0 0.0
    %1744 = vmatpush1.msra.mxu0 0.0
    %1745 = vmatprep.subr.mxu0 0.0
    %1746 = vmatpush1.msra.mxu0 0.0
    %1747 = vmatprep.subr.mxu0 0.0
    %1748 = vmatpush1.msra.mxu0 0.0
    %1749 = vmatprep.mubr.f32.mxu0 0.0
    %1750 = vmatmul.mubr.f32.gmra.mrb[0].mxu0 %v1683
    %v1751 = vpop.f32.mrb[0].mxu0
    %v1752 = vadd.f32 %v1678, %v1751
    %v1753 = vpop.f32.mrb[0].mxu0
    %1754 = vdwg.mxu0
    %vm1755 = vcmask 64512
    %1756 = vst.msk [vmem:[#allocation5] sm:$0xff] %vm1755, %v1752
    // Predicated region
    $region30: #{rnn_forward.1} parent=1 // pred_check
      _
    $region31: #{rnn_forward.1} parent=1 // pred_check_branch
      %1758 = sbr.rel (0) target = $region33
    $region32: #{rnn_forward.1} parent=1 // pred_region
      %s1760 = ssub.s32 128, 128
      %1761 = vsyncadd [#allocation4], %s1760
      %s1763 = sshll.u32 [#allocation5], 4
      %s1764 = int_to_ptr.vmem [resolvable:$true] %s1763
      %1766 = dma.vmem_to_hbm [thread:$0]  %s1764, 128, %s6, [#allocation4]
    $region33: #{rnn_forward.1} parent=1 // pred_fallthru
      _
    // Predicated region
    $region34: #{rnn_forward.1} parent=1 // pred_check
      _
    $region35: #{rnn_forward.1} parent=1 // pred_check_branch
      %1768 = sbr.rel (0) target = $region37
    $region36: #{rnn_forward.1} parent=1 // pred_region
      %1769 = dma.done [#allocation4], 128
    $region37: #{rnn_forward.1} parent=1 // pred_fallthru
      _
    %1770 = vsyncpa [#allocation3], 1
    %1771 = vsyncpa [#allocation4], 1

</llo_original>
